<compile_context>
chip_gen: v6e
topology: v6e:2x2x1
jax: 0.10.0
libtpu: 0.0.40
codegen_flags: <defaults>
</compile_context>

<pallas_src>
import functools

import numpy as np
import jax
import jax.numpy as jnp
from jax.experimental import pallas as pl
from jax.experimental.pallas import tpu as pltpu

# ---- small synthetic "bert-base-chinese"-like config ----
VOCAB = 128
HIDDEN = 32
NUM_LAYERS = 2
NUM_HEADS = 2
HEAD_DIM = HIDDEN // NUM_HEADS
INTERMEDIATE = 64
MAX_POS = 16
TYPE_VOCAB = 2
NUM_LABELS = 15
NUM_LABELS_PAD = 128          # lane-dense classifier width
LN_EPS = 1e-12
NEG_INF = -1e9

# ---- packed f32 vector-slab layout (one DMA for all tiny params) ----
ROW_EMB_G = 0
ROW_EMB_B = 1
# per layer l, rows 2+6l .. 7+6l : bo, ln1_g, ln1_b, bo2, ln2_g, ln2_b
ROW_POOL_B = 2 + 6 * NUM_LAYERS
ROW_WIDE0 = 3 + 6 * NUM_LAYERS            # rows ROW_WIDE0+l : [bqkv | bi]
VEC_ROWS = ROW_WIDE0 + NUM_LAYERS
VEC_COLS = 3 * HIDDEN + INTERMEDIATE      # 160


# ------------------------- in-kernel helpers -------------------------

def _layernorm(x, g, b):
    mu = jnp.mean(x, axis=-1, keepdims=True)
    var = jnp.mean((x - mu) ** 2, axis=-1, keepdims=True)
    return (x - mu) * jax.lax.rsqrt(var + LN_EPS) * g + b


def _bf16_dot(a, b):
    # bf16 MXU operands, f32 accumulation.
    return jnp.dot(a.astype(jnp.bfloat16), b.astype(jnp.bfloat16),
                   preferred_element_type=jnp.float32)


def _gelu(y):
    # TODO(synk): HF BERT uses erf-GELU; tanh approximation used here (numerically close).
    return 0.5 * y * (1.0 + jnp.tanh(0.7978845608028654 * (y + 0.044715 * y * y * y)))


# ------------------------- the fused kernel -------------------------

def _bert_kernel(emb_ref, tail_ref, mask_ref,
                 wqkv_ref, wo_ref, wi_ref, wo2_ref, w_head_ref, vecs_ref,
                 logits_ref, loss_ref,
                 *, batch, seq):
    scale = 1.0 / (HEAD_DIM ** 0.5)
    n = batch * seq

    vecs = vecs_ref[...]                      # (VEC_ROWS, VEC_COLS) f32
    batch_mask = mask_ref[...]                # (n, n) f32: 0 same-batch, -1e9 else

    # Embedding layernorm (no residual, eval mode -> no dropout).
    x = _layernorm(emb_ref[...],
                   vecs[ROW_EMB_G:ROW_EMB_G + 1, :HIDDEN],
                   vecs[ROW_EMB_B:ROW_EMB_B + 1, :HIDDEN])          # (n, H) f32

    for l in range(NUM_LAYERS):
        base = 2 + 6 * l
        b_qkv = vecs[ROW_WIDE0 + l:ROW_WIDE0 + l + 1, :3 * HIDDEN]  # (1, 3H)
        b_i = vecs[ROW_WIDE0 + l:ROW_WIDE0 + l + 1, 3 * HIDDEN:]    # (1, I)

        # Fused QKV projection: single (n, H) x (H, 3H) matmul.
        qkv = _bf16_dot(x, wqkv_ref[l]) + b_qkv                     # (n, 3H)

        # Batch-fused attention: per head, one (n,HD)x(HD,n) score matmul with
        # the block-diagonal batch mask; no attention mask needed (reference
        # passes none and sequences are unpadded).
        ctx_heads = []
        for h in range(NUM_HEADS):
            c0 = h * HEAD_DIM
            q = qkv[:, c0:c0 + HEAD_DIM]
            k = qkv[:, HIDDEN + c0:HIDDEN + c0 + HEAD_DIM]
            v = qkv[:, 2 * HIDDEN + c0:2 * HIDDEN + c0 + HEAD_DIM]
            s = jax.lax.dot_general(
                q.astype(jnp.bfloat16), k.astype(jnp.bfloat16),
                (((1,), (1,)), ((), ())),
                preferred_element_type=jnp.float32) * scale + batch_mask   # (n, n)
            m = jnp.max(s, axis=-1, keepdims=True)
            p = jnp.exp(s - m)
            p = p * pl.reciprocal(jnp.sum(p, axis=-1, keepdims=True), approx=True)
            ctx_heads.append(jnp.dot(p.astype(jnp.bfloat16), v.astype(jnp.bfloat16),
                                     preferred_element_type=jnp.float32))  # (n, HD)
        ctx = jnp.concatenate(ctx_heads, axis=-1)                   # (n, H), register value

        attn_out = _bf16_dot(ctx, wo_ref[l]) + vecs[base:base + 1, :HIDDEN]
        x = _layernorm(attn_out + x,
                       vecs[base + 1:base + 2, :HIDDEN],
                       vecs[base + 2:base + 3, :HIDDEN])

        h_mid = _gelu(_bf16_dot(x, wi_ref[l]) + b_i)
        h_out = _bf16_dot(h_mid, wo2_ref[l]) + vecs[base + 3:base + 4, :HIDDEN]
        x = _layernorm(h_out + x,
                       vecs[base + 4:base + 5, :HIDDEN],
                       vecs[base + 5:base + 6, :HIDDEN])

    # ---- pooler on the [CLS] rows (gathered via a tiny bf16 selection matmul) ----
    row_ids = jax.lax.broadcasted_iota(jnp.int32, (batch, n), 0)
    col_ids = jax.lax.broadcasted_iota(jnp.int32, (batch, n), 1)
    sel = (col_ids == row_ids * seq).astype(jnp.float32)            # (B, n), exact in bf16
    cls = _bf16_dot(sel, x)                                         # (B, H)

    w_head = w_head_ref[...]                                        # (H, H + 128) bf16
    pooled = jnp.tanh(_bf16_dot(cls, w_head[:, :HIDDEN])
                      + vecs[ROW_POOL_B:ROW_POOL_B + 1, :HIDDEN])   # (B, H)

    # ---- classifier (lane-dense, 128-wide; padded classes carry bias -1e9) ----
    tail = tail_ref[...]                                            # (B+1, 128)
    cls_b = tail[0:1, :]
    onehot = tail[1:, :]
    logits = _bf16_dot(pooled, w_head[:, HIDDEN:]) + cls_b          # (B, 128)
    logits_ref[...] = logits

    # ---- cross-entropy (mean over batch); padded classes contribute exp(-1e9)=0 ----
    m = jnp.max(logits, axis=-1, keepdims=True)
    lse = jnp.log(jnp.sum(jnp.exp(logits - m), axis=-1, keepdims=True)) + m   # (B, 1)
    nll = lse - jnp.sum(logits * onehot, axis=-1, keepdims=True)              # (B, 1)
    loss_ref[...] = jnp.sum(nll, axis=0, keepdims=True) * (1.0 / batch)       # (1, 1)


# ------------------------- wrapper -------------------------

def _full_spec(shape):
    ndim = len(shape)
    return pl.BlockSpec(shape, lambda i, _n=ndim: (0,) * _n)


def bert_forward(params, input_ids, token_type_ids, labels):
    """Returns (loss, logits) like BertForSequenceClassification(text, labels=label)[:2]."""
    B, S = input_ids.shape
    n = B * S
    positions = jnp.arange(S)

    # Embedding gathers are glue; everything downstream runs in one kernel.
    emb = (params["word_emb"][input_ids]
           + params["pos_emb"][positions][None, :, :]
           + params["type_emb"][token_type_ids]).reshape(n, HIDDEN).astype(jnp.float32)

    # Row 0: classifier bias (padded classes at -1e9); rows 1..B: label one-hots.
    onehot = jax.nn.one_hot(labels, NUM_LABELS_PAD, dtype=jnp.float32)
    tail = jnp.concatenate([params["cls_b"][None, :], onehot], axis=0)      # (B+1, 128)

    # Block-diagonal batch mask for the batch-fused attention (static constant).
    rb = np.arange(n) // S
    batch_mask = jnp.asarray(
        np.where(rb[:, None] == rb[None, :], 0.0, NEG_INF).astype(np.float32))

    inputs = (emb, tail, batch_mask,
              params["wqkv"], params["wo"], params["wi"], params["wo2"],
              params["w_head"], params["vecs"])

    # Advisory cost estimate (helps XLA schedule glue around the latency-bound launch).
    layer_flops = (2 * n * HIDDEN * 3 * HIDDEN                 # qkv
                   + NUM_HEADS * 2 * (2 * n * n * HEAD_DIM)    # scores + ctx
                   + 2 * n * HIDDEN * HIDDEN                   # wo
                   + 2 * n * HIDDEN * INTERMEDIATE             # wi
                   + 2 * n * INTERMEDIATE * HIDDEN)            # wo2
    head_flops = 2 * B * n * HIDDEN + 2 * B * HIDDEN * HIDDEN + 2 * B * HIDDEN * NUM_LABELS_PAD
    flops = NUM_LAYERS * layer_flops + head_flops
    transc = NUM_LAYERS * (NUM_HEADS * n * n + n * INTERMEDIATE) + B * HIDDEN + B * NUM_LABELS_PAD
    bytes_accessed = int(sum(int(a.size) * a.dtype.itemsize for a in inputs)
                         + B * NUM_LABELS_PAD * 4 + 4)

    logits_pad, loss = pl.pallas_call(
        functools.partial(_bert_kernel, batch=B, seq=S),
        out_shape=(jax.ShapeDtypeStruct((B, NUM_LABELS_PAD), jnp.float32),
                   jax.ShapeDtypeStruct((1, 1), jnp.float32)),
        grid=(1,),
        in_specs=[_full_spec(a.shape) for a in inputs],
        out_specs=(pl.BlockSpec((B, NUM_LABELS_PAD), lambda i: (0, 0)),
                   pl.BlockSpec((1, 1), lambda i: (0, 0))),
        compiler_params=pltpu.CompilerParams(dimension_semantics=("arbitrary",)),
        cost_estimate=pl.CostEstimate(flops=int(flops), transcendentals=int(transc),
                                      bytes_accessed=bytes_accessed),
    )(*inputs)

    return loss[0, 0], logits_pad[:, :NUM_LABELS]


# ------------------------- parameters -------------------------

def init_params(key):
    def nrm(k, shape):
        return (0.02 * jax.random.normal(k, shape)).astype(jnp.float32)

    keys = iter(jax.random.split(key, 8 * NUM_LAYERS + 8))

    wqkv, wo, wi, wo2 = [], [], [], []
    for _ in range(NUM_LAYERS):
        wq = nrm(next(keys), (HIDDEN, HIDDEN))
        wk = nrm(next(keys), (HIDDEN, HIDDEN))
        wv = nrm(next(keys), (HIDDEN, HIDDEN))
        wqkv.append(jnp.concatenate([wq, wk, wv], axis=1))          # (H, 3H)
        wo.append(nrm(next(keys), (HIDDEN, HIDDEN)))
        wi.append(nrm(next(keys), (HIDDEN, INTERMEDIATE)))
        wo2.append(nrm(next(keys), (INTERMEDIATE, HIDDEN)))

    # Packed f32 slab: LN gains/biases, dense biases, pooler bias, wide biases.
    vecs = jnp.zeros((VEC_ROWS, VEC_COLS), jnp.float32)
    vecs = vecs.at[ROW_EMB_G, :HIDDEN].set(1.0)                     # emb_ln_g
    for l in range(NUM_LAYERS):
        vecs = vecs.at[2 + 6 * l + 1, :HIDDEN].set(1.0)             # ln1_g
        vecs = vecs.at[2 + 6 * l + 4, :HIDDEN].set(1.0)             # ln2_g
    # (all biases are zero in this synthetic init; slab rows already zero)

    pool_w = nrm(next(keys), (HIDDEN, HIDDEN))
    cls_w = nrm(next(keys), (HIDDEN, NUM_LABELS))
    cls_w_pad = jnp.zeros((HIDDEN, NUM_LABELS_PAD), jnp.float32).at[:, :NUM_LABELS].set(cls_w)
    cls_b_pad = jnp.full((NUM_LABELS_PAD,), NEG_INF, jnp.float32).at[:NUM_LABELS].set(0.0)

    return {
        "word_emb": nrm(next(keys), (VOCAB, HIDDEN)),
        "pos_emb": nrm(next(keys), (MAX_POS, HIDDEN)),
        "type_emb": nrm(next(keys), (TYPE_VOCAB, HIDDEN)),
        "wqkv": jnp.stack(wqkv).astype(jnp.bfloat16),               # (L, H, 3H)
        "wo": jnp.stack(wo).astype(jnp.bfloat16),                   # (L, H, H)
        "wi": jnp.stack(wi).astype(jnp.bfloat16),                   # (L, H, I)
        "wo2": jnp.stack(wo2).astype(jnp.bfloat16),                 # (L, I, H)
        "w_head": jnp.concatenate([pool_w, cls_w_pad], axis=1).astype(jnp.bfloat16),  # (H, H+128)
        "vecs": vecs,                                               # (VEC_ROWS, 160)
        "cls_b": cls_b_pad,                                         # (128,)
    }


if __name__ == "__main__":
    key = jax.random.PRNGKey(0)
    pkey, ikey, lkey = jax.random.split(key, 3)
    params = init_params(pkey)

    B, S = 2, 8
    text = jax.random.randint(ikey, (B, S), 0, VOCAB, dtype=jnp.int32)     # token ids
    token_type_ids = jnp.zeros((B, S), dtype=jnp.int32)
    label = jax.random.randint(lkey, (B,), 0, NUM_LABELS, dtype=jnp.int32)

    loss, text_fea = jax.jit(bert_forward)(params, text, token_type_ids, label)
    jax.block_until_ready((loss, text_fea))
    assert text_fea.shape == (B, NUM_LABELS) and loss.shape == ()
    print("KERNEL_OK")
</pallas_src>

<mosaic_0001>
module attributes {stable_mosaic.version = 11 : i64} {
  func.func @_bert_kernel(%arg0: i32, %arg1: memref<16x32xf32, #tpu.memory_space<vmem>>, %arg2: memref<3x128xf32, #tpu.memory_space<vmem>>, %arg3: memref<16x16xf32, #tpu.memory_space<vmem>>, %arg4: memref<2x32x96xbf16, #tpu.memory_space<vmem>>, %arg5: memref<2x32x32xbf16, #tpu.memory_space<vmem>>, %arg6: memref<2x32x64xbf16, #tpu.memory_space<vmem>>, %arg7: memref<2x64x32xbf16, #tpu.memory_space<vmem>>, %arg8: memref<32x160xbf16, #tpu.memory_space<vmem>>, %arg9: memref<17x160xf32, #tpu.memory_space<vmem>>, %arg10: memref<2x128xf32, #tpu.memory_space<vmem>>, %arg11: memref<1x1xf32, #tpu.memory_space<vmem>>) attributes {dimension_semantics = [#tpu.dimension_semantics<arbitrary>], iteration_bounds = array<i64: 1>, scalar_prefetch = 0 : i64, scratch_operands = 0 : i64, tpu.core_type = #tpu.core_type<tc>, window_params = [{pipeline_mode = #tpu.pipeline_mode<synchronous>, transform_indices = @transform_0, window_bounds = array<i64: 16, 32>}, {pipeline_mode = #tpu.pipeline_mode<synchronous>, transform_indices = @transform_1, window_bounds = array<i64: 3, 128>}, {pipeline_mode = #tpu.pipeline_mode<synchronous>, transform_indices = @transform_2, window_bounds = array<i64: 16, 16>}, {pipeline_mode = #tpu.pipeline_mode<synchronous>, transform_indices = @transform_3, window_bounds = array<i64: 2, 32, 96>}, {pipeline_mode = #tpu.pipeline_mode<synchronous>, transform_indices = @transform_4, window_bounds = array<i64: 2, 32, 32>}, {pipeline_mode = #tpu.pipeline_mode<synchronous>, transform_indices = @transform_5, window_bounds = array<i64: 2, 32, 64>}, {pipeline_mode = #tpu.pipeline_mode<synchronous>, transform_indices = @transform_6, window_bounds = array<i64: 2, 64, 32>}, {pipeline_mode = #tpu.pipeline_mode<synchronous>, transform_indices = @transform_7, window_bounds = array<i64: 32, 160>}, {pipeline_mode = #tpu.pipeline_mode<synchronous>, transform_indices = @transform_8, window_bounds = array<i64: 17, 160>}, {pipeline_mode = #tpu.pipeline_mode<synchronous>, transform_indices = @transform_9, window_bounds = array<i64: 2, 128>}, {pipeline_mode = #tpu.pipeline_mode<synchronous>, transform_indices = @transform_10, window_bounds = array<i64: 1, 1>}]} {
    %c0 = arith.constant 0 : index
    %c0_0 = arith.constant 0 : index
    %0 = vector.load %arg9[%c0, %c0_0] : memref<17x160xf32, #tpu.memory_space<vmem>>, vector<17x160xf32>
    %c0_1 = arith.constant 0 : index
    %c0_2 = arith.constant 0 : index
    %1 = vector.load %arg3[%c0_1, %c0_2] : memref<16x16xf32, #tpu.memory_space<vmem>>, vector<16x16xf32>
    %c0_3 = arith.constant 0 : index
    %c0_4 = arith.constant 0 : index
    %2 = vector.load %arg1[%c0_3, %c0_4] : memref<16x32xf32, #tpu.memory_space<vmem>>, vector<16x32xf32>
    %3 = vector.extract_strided_slice %0 {offsets = [0, 0], sizes = [1, 32], strides = [1, 1]} : vector<17x160xf32> to vector<1x32xf32>
    %4 = vector.extract_strided_slice %0 {offsets = [1, 0], sizes = [1, 32], strides = [1, 1]} : vector<17x160xf32> to vector<1x32xf32>
    %cst = arith.constant dense<0.000000e+00> : vector<16xf32>
    %5 = vector.multi_reduction <add>, %2, %cst [1] : vector<16x32xf32> to vector<16xf32>
    %6 = vector.shape_cast %5 : vector<16xf32> to vector<16x1xf32>
    %cst_5 = arith.constant 3.200000e+01 : f32
    %7 = vector.broadcast %cst_5 : f32 to vector<16x1xf32>
    %8 = arith.divf %6, %7 : vector<16x1xf32>
    %9 = vector.broadcast %8 : vector<16x1xf32> to vector<16x32xf32>
    %10 = arith.subf %2, %9 : vector<16x32xf32>
    %11 = arith.mulf %10, %10 : vector<16x32xf32>
    %cst_6 = arith.constant dense<0.000000e+00> : vector<16xf32>
    %12 = vector.multi_reduction <add>, %11, %cst_6 [1] : vector<16x32xf32> to vector<16xf32>
    %13 = vector.shape_cast %12 : vector<16xf32> to vector<16x1xf32>
    %cst_7 = arith.constant 3.200000e+01 : f32
    %14 = vector.broadcast %cst_7 : f32 to vector<16x1xf32>
    %15 = arith.divf %13, %14 : vector<16x1xf32>
    %16 = vector.broadcast %8 : vector<16x1xf32> to vector<16x32xf32>
    %17 = arith.subf %2, %16 : vector<16x32xf32>
    %cst_8 = arith.constant 9.99999996E-13 : f32
    %18 = vector.broadcast %cst_8 : f32 to vector<16x1xf32>
    %19 = arith.addf %15, %18 : vector<16x1xf32>
    %20 = math.rsqrt %19 : vector<16x1xf32>
    %21 = vector.broadcast %20 : vector<16x1xf32> to vector<16x32xf32>
    %22 = arith.mulf %17, %21 : vector<16x32xf32>
    %23 = vector.broadcast %3 : vector<1x32xf32> to vector<16x32xf32>
    %24 = arith.mulf %22, %23 : vector<16x32xf32>
    %25 = vector.broadcast %4 : vector<1x32xf32> to vector<16x32xf32>
    %26 = arith.addf %24, %25 : vector<16x32xf32>
    %27 = vector.extract_strided_slice %0 {offsets = [15, 0], sizes = [1, 96], strides = [1, 1]} : vector<17x160xf32> to vector<1x96xf32>
    %28 = vector.extract_strided_slice %0 {offsets = [15, 96], sizes = [1, 64], strides = [1, 1]} : vector<17x160xf32> to vector<1x64xf32>
    %c0_9 = arith.constant 0 : index
    %c0_10 = arith.constant 0 : index
    %c0_11 = arith.constant 0 : index
    %29 = vector.load %arg4[%c0_9, %c0_10, %c0_11] : memref<2x32x96xbf16, #tpu.memory_space<vmem>>, vector<1x32x96xbf16>
    %30 = vector.shape_cast %29 : vector<1x32x96xbf16> to vector<32x96xbf16>
    %31 = arith.truncf %26 : vector<16x32xf32> to vector<16x32xbf16>
    %cst_12 = arith.constant dense<0.000000e+00> : vector<16x96xf32>
    %32 = tpu.matmul %31, %30, %cst_12 {dimension_numbers = #tpu.dot_dimension_numbers<[1], [0], [0], [1], [0, 0, 1, 1], [], []>} : vector<16x32xbf16>, vector<32x96xbf16>, vector<16x96xf32> -> vector<16x96xf32>
    %33 = vector.broadcast %27 : vector<1x96xf32> to vector<16x96xf32>
    %34 = arith.addf %32, %33 : vector<16x96xf32>
    %35 = vector.extract_strided_slice %34 {offsets = [0, 0], sizes = [16, 16], strides = [1, 1]} : vector<16x96xf32> to vector<16x16xf32>
    %36 = vector.extract_strided_slice %34 {offsets = [0, 32], sizes = [16, 16], strides = [1, 1]} : vector<16x96xf32> to vector<16x16xf32>
    %37 = vector.extract_strided_slice %34 {offsets = [0, 64], sizes = [16, 16], strides = [1, 1]} : vector<16x96xf32> to vector<16x16xf32>
    %38 = arith.truncf %35 : vector<16x16xf32> to vector<16x16xbf16>
    %39 = arith.truncf %36 : vector<16x16xf32> to vector<16x16xbf16>
    %cst_13 = arith.constant dense<0.000000e+00> : vector<16x16xf32>
    %40 = tpu.matmul %38, %39, %cst_13 {dimension_numbers = #tpu.dot_dimension_numbers<[1], [1], [0], [0], [0, 0, 1, 0], [], []>} : vector<16x16xbf16>, vector<16x16xbf16>, vector<16x16xf32> -> vector<16x16xf32>
    %cst_14 = arith.constant 2.500000e-01 : f32
    %41 = vector.broadcast %cst_14 : f32 to vector<16x16xf32>
    %42 = arith.mulf %40, %41 : vector<16x16xf32>
    %43 = arith.addf %42, %1 : vector<16x16xf32>
    %cst_15 = arith.constant dense<0xFF800000> : vector<16xf32>
    %44 = vector.multi_reduction <maximumf>, %43, %cst_15 [1] : vector<16x16xf32> to vector<16xf32>
    %45 = vector.shape_cast %44 : vector<16xf32> to vector<16x1xf32>
    %46 = vector.broadcast %45 : vector<16x1xf32> to vector<16x16xf32>
    %47 = arith.subf %43, %46 : vector<16x16xf32>
    %48 = math.exp %47 : vector<16x16xf32>
    %cst_16 = arith.constant dense<0.000000e+00> : vector<16xf32>
    %49 = vector.multi_reduction <add>, %48, %cst_16 [1] : vector<16x16xf32> to vector<16xf32>
    %50 = vector.shape_cast %49 : vector<16xf32> to vector<16x1xf32>
    %51 = tpu.reciprocal %50 {approx = true} : vector<16x1xf32> -> vector<16x1xf32>
    %52 = vector.broadcast %51 : vector<16x1xf32> to vector<16x16xf32>
    %53 = arith.mulf %48, %52 : vector<16x16xf32>
    %54 = arith.truncf %53 : vector<16x16xf32> to vector<16x16xbf16>
    %55 = arith.truncf %37 : vector<16x16xf32> to vector<16x16xbf16>
    %cst_17 = arith.constant dense<0.000000e+00> : vector<16x16xf32>
    %56 = tpu.matmul %54, %55, %cst_17 {dimension_numbers = #tpu.dot_dimension_numbers<[1], [0], [0], [1], [0, 0, 1, 1], [], []>} : vector<16x16xbf16>, vector<16x16xbf16>, vector<16x16xf32> -> vector<16x16xf32>
    %57 = vector.extract_strided_slice %34 {offsets = [0, 16], sizes = [16, 16], strides = [1, 1]} : vector<16x96xf32> to vector<16x16xf32>
    %58 = vector.extract_strided_slice %34 {offsets = [0, 48], sizes = [16, 16], strides = [1, 1]} : vector<16x96xf32> to vector<16x16xf32>
    %59 = vector.extract_strided_slice %34 {offsets = [0, 80], sizes = [16, 16], strides = [1, 1]} : vector<16x96xf32> to vector<16x16xf32>
    %60 = arith.truncf %57 : vector<16x16xf32> to vector<16x16xbf16>
    %61 = arith.truncf %58 : vector<16x16xf32> to vector<16x16xbf16>
    %cst_18 = arith.constant dense<0.000000e+00> : vector<16x16xf32>
    %62 = tpu.matmul %60, %61, %cst_18 {dimension_numbers = #tpu.dot_dimension_numbers<[1], [1], [0], [0], [0, 0, 1, 0], [], []>} : vector<16x16xbf16>, vector<16x16xbf16>, vector<16x16xf32> -> vector<16x16xf32>
    %cst_19 = arith.constant 2.500000e-01 : f32
    %63 = vector.broadcast %cst_19 : f32 to vector<16x16xf32>
    %64 = arith.mulf %62, %63 : vector<16x16xf32>
    %65 = arith.addf %64, %1 : vector<16x16xf32>
    %cst_20 = arith.constant dense<0xFF800000> : vector<16xf32>
    %66 = vector.multi_reduction <maximumf>, %65, %cst_20 [1] : vector<16x16xf32> to vector<16xf32>
    %67 = vector.shape_cast %66 : vector<16xf32> to vector<16x1xf32>
    %68 = vector.broadcast %67 : vector<16x1xf32> to vector<16x16xf32>
    %69 = arith.subf %65, %68 : vector<16x16xf32>
    %70 = math.exp %69 : vector<16x16xf32>
    %cst_21 = arith.constant dense<0.000000e+00> : vector<16xf32>
    %71 = vector.multi_reduction <add>, %70, %cst_21 [1] : vector<16x16xf32> to vector<16xf32>
    %72 = vector.shape_cast %71 : vector<16xf32> to vector<16x1xf32>
    %73 = tpu.reciprocal %72 {approx = true} : vector<16x1xf32> -> vector<16x1xf32>
    %74 = vector.broadcast %73 : vector<16x1xf32> to vector<16x16xf32>
    %75 = arith.mulf %70, %74 : vector<16x16xf32>
    %76 = arith.truncf %75 : vector<16x16xf32> to vector<16x16xbf16>
    %77 = arith.truncf %59 : vector<16x16xf32> to vector<16x16xbf16>
    %cst_22 = arith.constant dense<0.000000e+00> : vector<16x16xf32>
    %78 = tpu.matmul %76, %77, %cst_22 {dimension_numbers = #tpu.dot_dimension_numbers<[1], [0], [0], [1], [0, 0, 1, 1], [], []>} : vector<16x16xbf16>, vector<16x16xbf16>, vector<16x16xf32> -> vector<16x16xf32>
    %79 = tpu.concatenate %56, %78 in 1 : vector<16x16xf32>, vector<16x16xf32> -> vector<16x32xf32>
    %c0_23 = arith.constant 0 : index
    %c0_24 = arith.constant 0 : index
    %c0_25 = arith.constant 0 : index
    %80 = vector.load %arg5[%c0_23, %c0_24, %c0_25] : memref<2x32x32xbf16, #tpu.memory_space<vmem>>, vector<1x32x32xbf16>
    %81 = vector.shape_cast %80 : vector<1x32x32xbf16> to vector<32x32xbf16>
    %82 = arith.truncf %79 : vector<16x32xf32> to vector<16x32xbf16>
    %cst_26 = arith.constant dense<0.000000e+00> : vector<16x32xf32>
    %83 = tpu.matmul %82, %81, %cst_26 {dimension_numbers = #tpu.dot_dimension_numbers<[1], [0], [0], [1], [0, 0, 1, 1], [], []>} : vector<16x32xbf16>, vector<32x32xbf16>, vector<16x32xf32> -> vector<16x32xf32>
    %84 = vector.extract_strided_slice %0 {offsets = [2, 0], sizes = [1, 32], strides = [1, 1]} : vector<17x160xf32> to vector<1x32xf32>
    %85 = vector.broadcast %84 : vector<1x32xf32> to vector<16x32xf32>
    %86 = arith.addf %83, %85 : vector<16x32xf32>
    %87 = arith.addf %86, %26 : vector<16x32xf32>
    %88 = vector.extract_strided_slice %0 {offsets = [3, 0], sizes = [1, 32], strides = [1, 1]} : vector<17x160xf32> to vector<1x32xf32>
    %89 = vector.extract_strided_slice %0 {offsets = [4, 0], sizes = [1, 32], strides = [1, 1]} : vector<17x160xf32> to vector<1x32xf32>
    %cst_27 = arith.constant dense<0.000000e+00> : vector<16xf32>
    %90 = vector.multi_reduction <add>, %87, %cst_27 [1] : vector<16x32xf32> to vector<16xf32>
    %91 = vector.shape_cast %90 : vector<16xf32> to vector<16x1xf32>
    %cst_28 = arith.constant 3.200000e+01 : f32
    %92 = vector.broadcast %cst_28 : f32 to vector<16x1xf32>
    %93 = arith.divf %91, %92 : vector<16x1xf32>
    %94 = vector.broadcast %93 : vector<16x1xf32> to vector<16x32xf32>
    %95 = arith.subf %87, %94 : vector<16x32xf32>
    %96 = arith.mulf %95, %95 : vector<16x32xf32>
    %cst_29 = arith.constant dense<0.000000e+00> : vector<16xf32>
    %97 = vector.multi_reduction <add>, %96, %cst_29 [1] : vector<16x32xf32> to vector<16xf32>
    %98 = vector.shape_cast %97 : vector<16xf32> to vector<16x1xf32>
    %cst_30 = arith.constant 3.200000e+01 : f32
    %99 = vector.broadcast %cst_30 : f32 to vector<16x1xf32>
    %100 = arith.divf %98, %99 : vector<16x1xf32>
    %101 = vector.broadcast %93 : vector<16x1xf32> to vector<16x32xf32>
    %102 = arith.subf %87, %101 : vector<16x32xf32>
    %cst_31 = arith.constant 9.99999996E-13 : f32
    %103 = vector.broadcast %cst_31 : f32 to vector<16x1xf32>
    %104 = arith.addf %100, %103 : vector<16x1xf32>
    %105 = math.rsqrt %104 : vector<16x1xf32>
    %106 = vector.broadcast %105 : vector<16x1xf32> to vector<16x32xf32>
    %107 = arith.mulf %102, %106 : vector<16x32xf32>
    %108 = vector.broadcast %88 : vector<1x32xf32> to vector<16x32xf32>
    %109 = arith.mulf %107, %108 : vector<16x32xf32>
    %110 = vector.broadcast %89 : vector<1x32xf32> to vector<16x32xf32>
    %111 = arith.addf %109, %110 : vector<16x32xf32>
    %c0_32 = arith.constant 0 : index
    %c0_33 = arith.constant 0 : index
    %c0_34 = arith.constant 0 : index
    %112 = vector.load %arg6[%c0_32, %c0_33, %c0_34] : memref<2x32x64xbf16, #tpu.memory_space<vmem>>, vector<1x32x64xbf16>
    %113 = vector.shape_cast %112 : vector<1x32x64xbf16> to vector<32x64xbf16>
    %114 = arith.truncf %111 : vector<16x32xf32> to vector<16x32xbf16>
    %cst_35 = arith.constant dense<0.000000e+00> : vector<16x64xf32>
    %115 = tpu.matmul %114, %113, %cst_35 {dimension_numbers = #tpu.dot_dimension_numbers<[1], [0], [0], [1], [0, 0, 1, 1], [], []>} : vector<16x32xbf16>, vector<32x64xbf16>, vector<16x64xf32> -> vector<16x64xf32>
    %116 = vector.broadcast %28 : vector<1x64xf32> to vector<16x64xf32>
    %117 = arith.addf %115, %116 : vector<16x64xf32>
    %cst_36 = arith.constant 5.000000e-01 : f32
    %118 = vector.broadcast %cst_36 : f32 to vector<16x64xf32>
    %119 = arith.mulf %118, %117 : vector<16x64xf32>
    %cst_37 = arith.constant 4.471500e-02 : f32
    %120 = vector.broadcast %cst_37 : f32 to vector<16x64xf32>
    %121 = arith.mulf %120, %117 : vector<16x64xf32>
    %122 = arith.mulf %121, %117 : vector<16x64xf32>
    %123 = arith.mulf %122, %117 : vector<16x64xf32>
    %124 = arith.addf %117, %123 : vector<16x64xf32>
    %cst_38 = arith.constant 0.797884583 : f32
    %125 = vector.broadcast %cst_38 : f32 to vector<16x64xf32>
    %126 = arith.mulf %125, %124 : vector<16x64xf32>
    %127 = math.tanh %126 : vector<16x64xf32>
    %cst_39 = arith.constant 1.000000e+00 : f32
    %128 = vector.broadcast %cst_39 : f32 to vector<16x64xf32>
    %129 = arith.addf %128, %127 : vector<16x64xf32>
    %130 = arith.mulf %119, %129 : vector<16x64xf32>
    %c0_40 = arith.constant 0 : index
    %c0_41 = arith.constant 0 : index
    %c0_42 = arith.constant 0 : index
    %131 = vector.load %arg7[%c0_40, %c0_41, %c0_42] : memref<2x64x32xbf16, #tpu.memory_space<vmem>>, vector<1x64x32xbf16>
    %132 = vector.shape_cast %131 : vector<1x64x32xbf16> to vector<64x32xbf16>
    %133 = arith.truncf %130 : vector<16x64xf32> to vector<16x64xbf16>
    %cst_43 = arith.constant dense<0.000000e+00> : vector<16x32xf32>
    %134 = tpu.matmul %133, %132, %cst_43 {dimension_numbers = #tpu.dot_dimension_numbers<[1], [0], [0], [1], [0, 0, 1, 1], [], []>} : vector<16x64xbf16>, vector<64x32xbf16>, vector<16x32xf32> -> vector<16x32xf32>
    %135 = vector.extract_strided_slice %0 {offsets = [5, 0], sizes = [1, 32], strides = [1, 1]} : vector<17x160xf32> to vector<1x32xf32>
    %136 = vector.broadcast %135 : vector<1x32xf32> to vector<16x32xf32>
    %137 = arith.addf %134, %136 : vector<16x32xf32>
    %138 = arith.addf %137, %111 : vector<16x32xf32>
    %139 = vector.extract_strided_slice %0 {offsets = [6, 0], sizes = [1, 32], strides = [1, 1]} : vector<17x160xf32> to vector<1x32xf32>
    %140 = vector.extract_strided_slice %0 {offsets = [7, 0], sizes = [1, 32], strides = [1, 1]} : vector<17x160xf32> to vector<1x32xf32>
    %cst_44 = arith.constant dense<0.000000e+00> : vector<16xf32>
    %141 = vector.multi_reduction <add>, %138, %cst_44 [1] : vector<16x32xf32> to vector<16xf32>
    %142 = vector.shape_cast %141 : vector<16xf32> to vector<16x1xf32>
    %cst_45 = arith.constant 3.200000e+01 : f32
    %143 = vector.broadcast %cst_45 : f32 to vector<16x1xf32>
    %144 = arith.divf %142, %143 : vector<16x1xf32>
    %145 = vector.broadcast %144 : vector<16x1xf32> to vector<16x32xf32>
    %146 = arith.subf %138, %145 : vector<16x32xf32>
    %147 = arith.mulf %146, %146 : vector<16x32xf32>
    %cst_46 = arith.constant dense<0.000000e+00> : vector<16xf32>
    %148 = vector.multi_reduction <add>, %147, %cst_46 [1] : vector<16x32xf32> to vector<16xf32>
    %149 = vector.shape_cast %148 : vector<16xf32> to vector<16x1xf32>
    %cst_47 = arith.constant 3.200000e+01 : f32
    %150 = vector.broadcast %cst_47 : f32 to vector<16x1xf32>
    %151 = arith.divf %149, %150 : vector<16x1xf32>
    %152 = vector.broadcast %144 : vector<16x1xf32> to vector<16x32xf32>
    %153 = arith.subf %138, %152 : vector<16x32xf32>
    %cst_48 = arith.constant 9.99999996E-13 : f32
    %154 = vector.broadcast %cst_48 : f32 to vector<16x1xf32>
    %155 = arith.addf %151, %154 : vector<16x1xf32>
    %156 = math.rsqrt %155 : vector<16x1xf32>
    %157 = vector.broadcast %156 : vector<16x1xf32> to vector<16x32xf32>
    %158 = arith.mulf %153, %157 : vector<16x32xf32>
    %159 = vector.broadcast %139 : vector<1x32xf32> to vector<16x32xf32>
    %160 = arith.mulf %158, %159 : vector<16x32xf32>
    %161 = vector.broadcast %140 : vector<1x32xf32> to vector<16x32xf32>
    %162 = arith.addf %160, %161 : vector<16x32xf32>
    %163 = vector.extract_strided_slice %0 {offsets = [16, 0], sizes = [1, 96], strides = [1, 1]} : vector<17x160xf32> to vector<1x96xf32>
    %164 = vector.extract_strided_slice %0 {offsets = [16, 96], sizes = [1, 64], strides = [1, 1]} : vector<17x160xf32> to vector<1x64xf32>
    %c1 = arith.constant 1 : index
    %c0_49 = arith.constant 0 : index
    %c0_50 = arith.constant 0 : index
    %165 = vector.load %arg4[%c1, %c0_49, %c0_50] : memref<2x32x96xbf16, #tpu.memory_space<vmem>>, vector<1x32x96xbf16>
    %166 = vector.shape_cast %165 : vector<1x32x96xbf16> to vector<32x96xbf16>
    %167 = arith.truncf %162 : vector<16x32xf32> to vector<16x32xbf16>
    %cst_51 = arith.constant dense<0.000000e+00> : vector<16x96xf32>
    %168 = tpu.matmul %167, %166, %cst_51 {dimension_numbers = #tpu.dot_dimension_numbers<[1], [0], [0], [1], [0, 0, 1, 1], [], []>} : vector<16x32xbf16>, vector<32x96xbf16>, vector<16x96xf32> -> vector<16x96xf32>
    %169 = vector.broadcast %163 : vector<1x96xf32> to vector<16x96xf32>
    %170 = arith.addf %168, %169 : vector<16x96xf32>
    %171 = vector.extract_strided_slice %170 {offsets = [0, 0], sizes = [16, 16], strides = [1, 1]} : vector<16x96xf32> to vector<16x16xf32>
    %172 = vector.extract_strided_slice %170 {offsets = [0, 32], sizes = [16, 16], strides = [1, 1]} : vector<16x96xf32> to vector<16x16xf32>
    %173 = vector.extract_strided_slice %170 {offsets = [0, 64], sizes = [16, 16], strides = [1, 1]} : vector<16x96xf32> to vector<16x16xf32>
    %174 = arith.truncf %171 : vector<16x16xf32> to vector<16x16xbf16>
    %175 = arith.truncf %172 : vector<16x16xf32> to vector<16x16xbf16>
    %cst_52 = arith.constant dense<0.000000e+00> : vector<16x16xf32>
    %176 = tpu.matmul %174, %175, %cst_52 {dimension_numbers = #tpu.dot_dimension_numbers<[1], [1], [0], [0], [0, 0, 1, 0], [], []>} : vector<16x16xbf16>, vector<16x16xbf16>, vector<16x16xf32> -> vector<16x16xf32>
    %cst_53 = arith.constant 2.500000e-01 : f32
    %177 = vector.broadcast %cst_53 : f32 to vector<16x16xf32>
    %178 = arith.mulf %176, %177 : vector<16x16xf32>
    %179 = arith.addf %178, %1 : vector<16x16xf32>
    %cst_54 = arith.constant dense<0xFF800000> : vector<16xf32>
    %180 = vector.multi_reduction <maximumf>, %179, %cst_54 [1] : vector<16x16xf32> to vector<16xf32>
    %181 = vector.shape_cast %180 : vector<16xf32> to vector<16x1xf32>
    %182 = vector.broadcast %181 : vector<16x1xf32> to vector<16x16xf32>
    %183 = arith.subf %179, %182 : vector<16x16xf32>
    %184 = math.exp %183 : vector<16x16xf32>
    %cst_55 = arith.constant dense<0.000000e+00> : vector<16xf32>
    %185 = vector.multi_reduction <add>, %184, %cst_55 [1] : vector<16x16xf32> to vector<16xf32>
    %186 = vector.shape_cast %185 : vector<16xf32> to vector<16x1xf32>
    %187 = tpu.reciprocal %186 {approx = true} : vector<16x1xf32> -> vector<16x1xf32>
    %188 = vector.broadcast %187 : vector<16x1xf32> to vector<16x16xf32>
    %189 = arith.mulf %184, %188 : vector<16x16xf32>
    %190 = arith.truncf %189 : vector<16x16xf32> to vector<16x16xbf16>
    %191 = arith.truncf %173 : vector<16x16xf32> to vector<16x16xbf16>
    %cst_56 = arith.constant dense<0.000000e+00> : vector<16x16xf32>
    %192 = tpu.matmul %190, %191, %cst_56 {dimension_numbers = #tpu.dot_dimension_numbers<[1], [0], [0], [1], [0, 0, 1, 1], [], []>} : vector<16x16xbf16>, vector<16x16xbf16>, vector<16x16xf32> -> vector<16x16xf32>
    %193 = vector.extract_strided_slice %170 {offsets = [0, 16], sizes = [16, 16], strides = [1, 1]} : vector<16x96xf32> to vector<16x16xf32>
    %194 = vector.extract_strided_slice %170 {offsets = [0, 48], sizes = [16, 16], strides = [1, 1]} : vector<16x96xf32> to vector<16x16xf32>
    %195 = vector.extract_strided_slice %170 {offsets = [0, 80], sizes = [16, 16], strides = [1, 1]} : vector<16x96xf32> to vector<16x16xf32>
    %196 = arith.truncf %193 : vector<16x16xf32> to vector<16x16xbf16>
    %197 = arith.truncf %194 : vector<16x16xf32> to vector<16x16xbf16>
    %cst_57 = arith.constant dense<0.000000e+00> : vector<16x16xf32>
    %198 = tpu.matmul %196, %197, %cst_57 {dimension_numbers = #tpu.dot_dimension_numbers<[1], [1], [0], [0], [0, 0, 1, 0], [], []>} : vector<16x16xbf16>, vector<16x16xbf16>, vector<16x16xf32> -> vector<16x16xf32>
    %cst_58 = arith.constant 2.500000e-01 : f32
    %199 = vector.broadcast %cst_58 : f32 to vector<16x16xf32>
    %200 = arith.mulf %198, %199 : vector<16x16xf32>
    %201 = arith.addf %200, %1 : vector<16x16xf32>
    %cst_59 = arith.constant dense<0xFF800000> : vector<16xf32>
    %202 = vector.multi_reduction <maximumf>, %201, %cst_59 [1] : vector<16x16xf32> to vector<16xf32>
    %203 = vector.shape_cast %202 : vector<16xf32> to vector<16x1xf32>
    %204 = vector.broadcast %203 : vector<16x1xf32> to vector<16x16xf32>
    %205 = arith.subf %201, %204 : vector<16x16xf32>
    %206 = math.exp %205 : vector<16x16xf32>
    %cst_60 = arith.constant dense<0.000000e+00> : vector<16xf32>
    %207 = vector.multi_reduction <add>, %206, %cst_60 [1] : vector<16x16xf32> to vector<16xf32>
    %208 = vector.shape_cast %207 : vector<16xf32> to vector<16x1xf32>
    %209 = tpu.reciprocal %208 {approx = true} : vector<16x1xf32> -> vector<16x1xf32>
    %210 = vector.broadcast %209 : vector<16x1xf32> to vector<16x16xf32>
    %211 = arith.mulf %206, %210 : vector<16x16xf32>
    %212 = arith.truncf %211 : vector<16x16xf32> to vector<16x16xbf16>
    %213 = arith.truncf %195 : vector<16x16xf32> to vector<16x16xbf16>
    %cst_61 = arith.constant dense<0.000000e+00> : vector<16x16xf32>
    %214 = tpu.matmul %212, %213, %cst_61 {dimension_numbers = #tpu.dot_dimension_numbers<[1], [0], [0], [1], [0, 0, 1, 1], [], []>} : vector<16x16xbf16>, vector<16x16xbf16>, vector<16x16xf32> -> vector<16x16xf32>
    %215 = tpu.concatenate %192, %214 in 1 : vector<16x16xf32>, vector<16x16xf32> -> vector<16x32xf32>
    %c1_62 = arith.constant 1 : index
    %c0_63 = arith.constant 0 : index
    %c0_64 = arith.constant 0 : index
    %216 = vector.load %arg5[%c1_62, %c0_63, %c0_64] : memref<2x32x32xbf16, #tpu.memory_space<vmem>>, vector<1x32x32xbf16>
    %217 = vector.shape_cast %216 : vector<1x32x32xbf16> to vector<32x32xbf16>
    %218 = arith.truncf %215 : vector<16x32xf32> to vector<16x32xbf16>
    %cst_65 = arith.constant dense<0.000000e+00> : vector<16x32xf32>
    %219 = tpu.matmul %218, %217, %cst_65 {dimension_numbers = #tpu.dot_dimension_numbers<[1], [0], [0], [1], [0, 0, 1, 1], [], []>} : vector<16x32xbf16>, vector<32x32xbf16>, vector<16x32xf32> -> vector<16x32xf32>
    %220 = vector.extract_strided_slice %0 {offsets = [8, 0], sizes = [1, 32], strides = [1, 1]} : vector<17x160xf32> to vector<1x32xf32>
    %221 = vector.broadcast %220 : vector<1x32xf32> to vector<16x32xf32>
    %222 = arith.addf %219, %221 : vector<16x32xf32>
    %223 = arith.addf %222, %162 : vector<16x32xf32>
    %224 = vector.extract_strided_slice %0 {offsets = [9, 0], sizes = [1, 32], strides = [1, 1]} : vector<17x160xf32> to vector<1x32xf32>
    %225 = vector.extract_strided_slice %0 {offsets = [10, 0], sizes = [1, 32], strides = [1, 1]} : vector<17x160xf32> to vector<1x32xf32>
    %cst_66 = arith.constant dense<0.000000e+00> : vector<16xf32>
    %226 = vector.multi_reduction <add>, %223, %cst_66 [1] : vector<16x32xf32> to vector<16xf32>
    %227 = vector.shape_cast %226 : vector<16xf32> to vector<16x1xf32>
    %cst_67 = arith.constant 3.200000e+01 : f32
    %228 = vector.broadcast %cst_67 : f32 to vector<16x1xf32>
    %229 = arith.divf %227, %228 : vector<16x1xf32>
    %230 = vector.broadcast %229 : vector<16x1xf32> to vector<16x32xf32>
    %231 = arith.subf %223, %230 : vector<16x32xf32>
    %232 = arith.mulf %231, %231 : vector<16x32xf32>
    %cst_68 = arith.constant dense<0.000000e+00> : vector<16xf32>
    %233 = vector.multi_reduction <add>, %232, %cst_68 [1] : vector<16x32xf32> to vector<16xf32>
    %234 = vector.shape_cast %233 : vector<16xf32> to vector<16x1xf32>
    %cst_69 = arith.constant 3.200000e+01 : f32
    %235 = vector.broadcast %cst_69 : f32 to vector<16x1xf32>
    %236 = arith.divf %234, %235 : vector<16x1xf32>
    %237 = vector.broadcast %229 : vector<16x1xf32> to vector<16x32xf32>
    %238 = arith.subf %223, %237 : vector<16x32xf32>
    %cst_70 = arith.constant 9.99999996E-13 : f32
    %239 = vector.broadcast %cst_70 : f32 to vector<16x1xf32>
    %240 = arith.addf %236, %239 : vector<16x1xf32>
    %241 = math.rsqrt %240 : vector<16x1xf32>
    %242 = vector.broadcast %241 : vector<16x1xf32> to vector<16x32xf32>
    %243 = arith.mulf %238, %242 : vector<16x32xf32>
    %244 = vector.broadcast %224 : vector<1x32xf32> to vector<16x32xf32>
    %245 = arith.mulf %243, %244 : vector<16x32xf32>
    %246 = vector.broadcast %225 : vector<1x32xf32> to vector<16x32xf32>
    %247 = arith.addf %245, %246 : vector<16x32xf32>
    %c1_71 = arith.constant 1 : index
    %c0_72 = arith.constant 0 : index
    %c0_73 = arith.constant 0 : index
    %248 = vector.load %arg6[%c1_71, %c0_72, %c0_73] : memref<2x32x64xbf16, #tpu.memory_space<vmem>>, vector<1x32x64xbf16>
    %249 = vector.shape_cast %248 : vector<1x32x64xbf16> to vector<32x64xbf16>
    %250 = arith.truncf %247 : vector<16x32xf32> to vector<16x32xbf16>
    %cst_74 = arith.constant dense<0.000000e+00> : vector<16x64xf32>
    %251 = tpu.matmul %250, %249, %cst_74 {dimension_numbers = #tpu.dot_dimension_numbers<[1], [0], [0], [1], [0, 0, 1, 1], [], []>} : vector<16x32xbf16>, vector<32x64xbf16>, vector<16x64xf32> -> vector<16x64xf32>
    %252 = vector.broadcast %164 : vector<1x64xf32> to vector<16x64xf32>
    %253 = arith.addf %251, %252 : vector<16x64xf32>
    %cst_75 = arith.constant 5.000000e-01 : f32
    %254 = vector.broadcast %cst_75 : f32 to vector<16x64xf32>
    %255 = arith.mulf %254, %253 : vector<16x64xf32>
    %cst_76 = arith.constant 4.471500e-02 : f32
    %256 = vector.broadcast %cst_76 : f32 to vector<16x64xf32>
    %257 = arith.mulf %256, %253 : vector<16x64xf32>
    %258 = arith.mulf %257, %253 : vector<16x64xf32>
    %259 = arith.mulf %258, %253 : vector<16x64xf32>
    %260 = arith.addf %253, %259 : vector<16x64xf32>
    %cst_77 = arith.constant 0.797884583 : f32
    %261 = vector.broadcast %cst_77 : f32 to vector<16x64xf32>
    %262 = arith.mulf %261, %260 : vector<16x64xf32>
    %263 = math.tanh %262 : vector<16x64xf32>
    %cst_78 = arith.constant 1.000000e+00 : f32
    %264 = vector.broadcast %cst_78 : f32 to vector<16x64xf32>
    %265 = arith.addf %264, %263 : vector<16x64xf32>
    %266 = arith.mulf %255, %265 : vector<16x64xf32>
    %c1_79 = arith.constant 1 : index
    %c0_80 = arith.constant 0 : index
    %c0_81 = arith.constant 0 : index
    %267 = vector.load %arg7[%c1_79, %c0_80, %c0_81] : memref<2x64x32xbf16, #tpu.memory_space<vmem>>, vector<1x64x32xbf16>
    %268 = vector.shape_cast %267 : vector<1x64x32xbf16> to vector<64x32xbf16>
    %269 = arith.truncf %266 : vector<16x64xf32> to vector<16x64xbf16>
    %cst_82 = arith.constant dense<0.000000e+00> : vector<16x32xf32>
    %270 = tpu.matmul %269, %268, %cst_82 {dimension_numbers = #tpu.dot_dimension_numbers<[1], [0], [0], [1], [0, 0, 1, 1], [], []>} : vector<16x64xbf16>, vector<64x32xbf16>, vector<16x32xf32> -> vector<16x32xf32>
    %271 = vector.extract_strided_slice %0 {offsets = [11, 0], sizes = [1, 32], strides = [1, 1]} : vector<17x160xf32> to vector<1x32xf32>
    %272 = vector.broadcast %271 : vector<1x32xf32> to vector<16x32xf32>
    %273 = arith.addf %270, %272 : vector<16x32xf32>
    %274 = arith.addf %273, %247 : vector<16x32xf32>
    %275 = vector.extract_strided_slice %0 {offsets = [12, 0], sizes = [1, 32], strides = [1, 1]} : vector<17x160xf32> to vector<1x32xf32>
    %276 = vector.extract_strided_slice %0 {offsets = [13, 0], sizes = [1, 32], strides = [1, 1]} : vector<17x160xf32> to vector<1x32xf32>
    %cst_83 = arith.constant dense<0.000000e+00> : vector<16xf32>
    %277 = vector.multi_reduction <add>, %274, %cst_83 [1] : vector<16x32xf32> to vector<16xf32>
    %278 = vector.shape_cast %277 : vector<16xf32> to vector<16x1xf32>
    %cst_84 = arith.constant 3.200000e+01 : f32
    %279 = vector.broadcast %cst_84 : f32 to vector<16x1xf32>
    %280 = arith.divf %278, %279 : vector<16x1xf32>
    %281 = vector.broadcast %280 : vector<16x1xf32> to vector<16x32xf32>
    %282 = arith.subf %274, %281 : vector<16x32xf32>
    %283 = arith.mulf %282, %282 : vector<16x32xf32>
    %cst_85 = arith.constant dense<0.000000e+00> : vector<16xf32>
    %284 = vector.multi_reduction <add>, %283, %cst_85 [1] : vector<16x32xf32> to vector<16xf32>
    %285 = vector.shape_cast %284 : vector<16xf32> to vector<16x1xf32>
    %cst_86 = arith.constant 3.200000e+01 : f32
    %286 = vector.broadcast %cst_86 : f32 to vector<16x1xf32>
    %287 = arith.divf %285, %286 : vector<16x1xf32>
    %288 = vector.broadcast %280 : vector<16x1xf32> to vector<16x32xf32>
    %289 = arith.subf %274, %288 : vector<16x32xf32>
    %cst_87 = arith.constant 9.99999996E-13 : f32
    %290 = vector.broadcast %cst_87 : f32 to vector<16x1xf32>
    %291 = arith.addf %287, %290 : vector<16x1xf32>
    %292 = math.rsqrt %291 : vector<16x1xf32>
    %293 = vector.broadcast %292 : vector<16x1xf32> to vector<16x32xf32>
    %294 = arith.mulf %289, %293 : vector<16x32xf32>
    %295 = vector.broadcast %275 : vector<1x32xf32> to vector<16x32xf32>
    %296 = arith.mulf %294, %295 : vector<16x32xf32>
    %297 = vector.broadcast %276 : vector<1x32xf32> to vector<16x32xf32>
    %298 = arith.addf %296, %297 : vector<16x32xf32>
    %299 = tpu.iota {dimensions = array<i32: 0>} : vector<2x16xi32>
    %300 = tpu.iota {dimensions = array<i32: 1>} : vector<2x16xi32>
    %c8_i32 = arith.constant 8 : i32
    %301 = vector.broadcast %c8_i32 : i32 to vector<2x16xi32>
    %302 = arith.muli %299, %301 : vector<2x16xi32>
    %303 = arith.cmpi eq, %300, %302 : vector<2x16xi32>
    %304 = arith.extui %303 : vector<2x16xi1> to vector<2x16xi32>
    %305 = arith.sitofp %304 : vector<2x16xi32> to vector<2x16xf32>
    %306 = arith.truncf %305 : vector<2x16xf32> to vector<2x16xbf16>
    %307 = arith.truncf %298 : vector<16x32xf32> to vector<16x32xbf16>
    %cst_88 = arith.constant dense<0.000000e+00> : vector<2x32xf32>
    %308 = tpu.matmul %306, %307, %cst_88 {dimension_numbers = #tpu.dot_dimension_numbers<[1], [0], [0], [1], [0, 0, 1, 1], [], []>} : vector<2x16xbf16>, vector<16x32xbf16>, vector<2x32xf32> -> vector<2x32xf32>
    %c0_89 = arith.constant 0 : index
    %c0_90 = arith.constant 0 : index
    %309 = vector.load %arg8[%c0_89, %c0_90] : memref<32x160xbf16, #tpu.memory_space<vmem>>, vector<32x160xbf16>
    %310 = vector.extract_strided_slice %309 {offsets = [0, 0], sizes = [32, 32], strides = [1, 1]} : vector<32x160xbf16> to vector<32x32xbf16>
    %311 = arith.truncf %308 : vector<2x32xf32> to vector<2x32xbf16>
    %cst_91 = arith.constant dense<0.000000e+00> : vector<2x32xf32>
    %312 = tpu.matmul %311, %310, %cst_91 {dimension_numbers = #tpu.dot_dimension_numbers<[1], [0], [0], [1], [0, 0, 1, 1], [], []>} : vector<2x32xbf16>, vector<32x32xbf16>, vector<2x32xf32> -> vector<2x32xf32>
    %313 = vector.extract_strided_slice %0 {offsets = [14, 0], sizes = [1, 32], strides = [1, 1]} : vector<17x160xf32> to vector<1x32xf32>
    %314 = vector.broadcast %313 : vector<1x32xf32> to vector<2x32xf32>
    %315 = arith.addf %312, %314 : vector<2x32xf32>
    %316 = math.tanh %315 : vector<2x32xf32>
    %c0_92 = arith.constant 0 : index
    %c0_93 = arith.constant 0 : index
    %317 = vector.load %arg2[%c0_92, %c0_93] : memref<3x128xf32, #tpu.memory_space<vmem>>, vector<3x128xf32>
    %318 = vector.extract_strided_slice %317 {offsets = [0, 0], sizes = [1, 128], strides = [1, 1]} : vector<3x128xf32> to vector<1x128xf32>
    %319 = vector.extract_strided_slice %317 {offsets = [1, 0], sizes = [2, 128], strides = [1, 1]} : vector<3x128xf32> to vector<2x128xf32>
    %320 = vector.extract_strided_slice %309 {offsets = [0, 32], sizes = [32, 128], strides = [1, 1]} : vector<32x160xbf16> to vector<32x128xbf16>
    %321 = arith.truncf %316 : vector<2x32xf32> to vector<2x32xbf16>
    %cst_94 = arith.constant dense<0.000000e+00> : vector<2x128xf32>
    %322 = tpu.matmul %321, %320, %cst_94 {dimension_numbers = #tpu.dot_dimension_numbers<[1], [0], [0], [1], [0, 0, 1, 1], [], []>} : vector<2x32xbf16>, vector<32x128xbf16>, vector<2x128xf32> -> vector<2x128xf32>
    %323 = vector.broadcast %318 : vector<1x128xf32> to vector<2x128xf32>
    %324 = arith.addf %322, %323 : vector<2x128xf32>
    %c0_95 = arith.constant 0 : index
    %c0_96 = arith.constant 0 : index
    %325 = vector.load %arg10[%c0_95, %c0_96] : memref<2x128xf32, #tpu.memory_space<vmem>>, vector<2x128xf32>
    tpu.vector_store %arg10[%c0_95, %c0_96], %324 {strides = array<i32>} : memref<2x128xf32, #tpu.memory_space<vmem>>, vector<2x128xf32>,
    %cst_97 = arith.constant dense<0xFF800000> : vector<2xf32>
    %326 = vector.multi_reduction <maximumf>, %324, %cst_97 [1] : vector<2x128xf32> to vector<2xf32>
    %327 = vector.shape_cast %326 : vector<2xf32> to vector<2x1xf32>
    %328 = vector.broadcast %327 : vector<2x1xf32> to vector<2x128xf32>
    %329 = arith.subf %324, %328 : vector<2x128xf32>
    %330 = math.exp %329 : vector<2x128xf32>
    %cst_98 = arith.constant dense<0.000000e+00> : vector<2xf32>
    %331 = vector.multi_reduction <add>, %330, %cst_98 [1] : vector<2x128xf32> to vector<2xf32>
    %332 = vector.shape_cast %331 : vector<2xf32> to vector<2x1xf32>
    %333 = math.log %332 : vector<2x1xf32>
    %334 = arith.addf %333, %327 : vector<2x1xf32>
    %335 = arith.mulf %324, %319 : vector<2x128xf32>
    %cst_99 = arith.constant dense<0.000000e+00> : vector<2xf32>
    %336 = vector.multi_reduction <add>, %335, %cst_99 [1] : vector<2x128xf32> to vector<2xf32>
    %337 = vector.shape_cast %336 : vector<2xf32> to vector<2x1xf32>
    %338 = arith.subf %334, %337 : vector<2x1xf32>
    %cst_100 = arith.constant dense<0.000000e+00> : vector<1xf32>
    %339 = vector.multi_reduction <add>, %338, %cst_100 [0] : vector<2x1xf32> to vector<1xf32>
    %340 = vector.shape_cast %339 : vector<1xf32> to vector<1x1xf32>
    %cst_101 = arith.constant 5.000000e-01 : f32
    %341 = vector.broadcast %cst_101 : f32 to vector<1x1xf32>
    %342 = arith.mulf %340, %341 : vector<1x1xf32>
    %c0_102 = arith.constant 0 : index
    %c0_103 = arith.constant 0 : index
    %343 = vector.load %arg11[%c0_102, %c0_103] : memref<1x1xf32, #tpu.memory_space<vmem>>, vector<1x1xf32>
    tpu.vector_store %arg11[%c0_102, %c0_103], %342 {strides = array<i32>} : memref<1x1xf32, #tpu.memory_space<vmem>>, vector<1x1xf32>,
    return
  }
  func.func @transform_0(%arg0: i32) -> (i32, i32) {
    %c0_i32 = arith.constant 0 : i32
    %c0_i32_0 = arith.constant 0 : i32
    %c0_i32_1 = arith.constant 0 : i32
    return %c0_i32, %c0_i32_0 : i32, i32
  }
  func.func @transform_1(%arg0: i32) -> (i32, i32) {
    %c0_i32 = arith.constant 0 : i32
    %c0_i32_0 = arith.constant 0 : i32
    %c0_i32_1 = arith.constant 0 : i32
    return %c0_i32, %c0_i32_0 : i32, i32
  }
  func.func @transform_2(%arg0: i32) -> (i32, i32) {
    %c0_i32 = arith.constant 0 : i32
    %c0_i32_0 = arith.constant 0 : i32
    %c0_i32_1 = arith.constant 0 : i32
    return %c0_i32, %c0_i32_0 : i32, i32
  }
  func.func @transform_3(%arg0: i32) -> (i32, i32, i32) {
    %c0_i32 = arith.constant 0 : i32
    %c0_i32_0 = arith.constant 0 : i32
    %c0_i32_1 = arith.constant 0 : i32
    %c0_i32_2 = arith.constant 0 : i32
    return %c0_i32, %c0_i32_0, %c0_i32_1 : i32, i32, i32
  }
  func.func @transform_4(%arg0: i32) -> (i32, i32, i32) {
    %c0_i32 = arith.constant 0 : i32
    %c0_i32_0 = arith.constant 0 : i32
    %c0_i32_1 = arith.constant 0 : i32
    %c0_i32_2 = arith.constant 0 : i32
    return %c0_i32, %c0_i32_0, %c0_i32_1 : i32, i32, i32
  }
  func.func @transform_5(%arg0: i32) -> (i32, i32, i32) {
    %c0_i32 = arith.constant 0 : i32
    %c0_i32_0 = arith.constant 0 : i32
    %c0_i32_1 = arith.constant 0 : i32
    %c0_i32_2 = arith.constant 0 : i32
    return %c0_i32, %c0_i32_0, %c0_i32_1 : i32, i32, i32
  }
  func.func @transform_6(%arg0: i32) -> (i32, i32, i32) {
    %c0_i32 = arith.constant 0 : i32
    %c0_i32_0 = arith.constant 0 : i32
    %c0_i32_1 = arith.constant 0 : i32
    %c0_i32_2 = arith.constant 0 : i32
    return %c0_i32, %c0_i32_0, %c0_i32_1 : i32, i32, i32
  }
  func.func @transform_7(%arg0: i32) -> (i32, i32) {
    %c0_i32 = arith.constant 0 : i32
    %c0_i32_0 = arith.constant 0 : i32
    %c0_i32_1 = arith.constant 0 : i32
    return %c0_i32, %c0_i32_0 : i32, i32
  }
  func.func @transform_8(%arg0: i32) -> (i32, i32) {
    %c0_i32 = arith.constant 0 : i32
    %c0_i32_0 = arith.constant 0 : i32
    %c0_i32_1 = arith.constant 0 : i32
    return %c0_i32, %c0_i32_0 : i32, i32
  }
  func.func @transform_9(%arg0: i32) -> (i32, i32) {
    %c0_i32 = arith.constant 0 : i32
    %c0_i32_0 = arith.constant 0 : i32
    %c0_i32_1 = arith.constant 0 : i32
    return %c0_i32, %c0_i32_0 : i32, i32
  }
  func.func @transform_10(%arg0: i32) -> (i32, i32) {
    %c0_i32 = arith.constant 0 : i32
    %c0_i32_0 = arith.constant 0 : i32
    %c0_i32_1 = arith.constant 0 : i32
    return %c0_i32, %c0_i32_0 : i32, i32
  }
}

</mosaic_0001>

<llo_original>
// kernel: bert_forward.1
$region0: #{bert_forward.1}
  #allocation0 [shape = 'u32[]', space=smem, size = 0x4, offset = 0x4, fixed_abs, tag = 'smem constant byte address 0x4 - core index']
  #allocation1 [shape = 'u32[144,128]{1,0:T(1,128)}', space=vmem, size = 0x12000, scoped, tag = 'internal scratch']
  %s0 = inlined_call_operand.vmem [shape: f32[16,32], index: 0, kind: input, shape index: {}]
  %s1 = inlined_call_operand.vmem [shape: f32[3,128], index: 1, kind: input, shape index: {}]
  %s2 = inlined_call_operand.vmem [shape: f32[16,16], index: 2, kind: input, shape index: {}]
  %s3 = inlined_call_operand.vmem [shape: bf16[2,32,96], index: 3, kind: input, shape index: {}]
  %s4 = inlined_call_operand.vmem [shape: bf16[2,32,32], index: 4, kind: input, shape index: {}]
  %s5 = inlined_call_operand.vmem [shape: bf16[2,32,64], index: 5, kind: input, shape index: {}]
  %s6 = inlined_call_operand.vmem [shape: bf16[2,64,32], index: 6, kind: input, shape index: {}]
  %s7 = inlined_call_operand.vmem [shape: bf16[32,160], index: 7, kind: input, shape index: {}]
  %s8 = inlined_call_operand.vmem [shape: f32[17,160], index: 8, kind: input, shape index: {}]
  %s9 = inlined_call_operand.hbm [shape: f32[2,128], index: 9, kind: output, shape index: {0}]
  %s10 = inlined_call_operand.hbm [shape: f32[1,1], index: 10, kind: output, shape index: {1}]
  %11 = xla_tuple %s9, %s10
  %s12 = sld [smem:[#allocation0]]
  $region54: #{bert_forward.1} parent=0
    _
  %s14 = ssub.s32 1, %s12
  %s15 = scalar_select 0, %s14, %s12
  $region1: #{bert_forward.1} parent=0
    #allocation2 [shape = 'u8[1024]{0}', space=vmem, size = 0x400, scoped, tag = 'output window, operand 0, single buffered']
    #allocation3 [shape = 's32[1]{0}', space=sflag, size = 0x4, scoped, tag = 'scoped memory for bert_forward.1']
    #allocation4 [shape = 'u8[512]{0}', space=vmem, size = 0x400, scoped, tag = 'output window, operand 1, single buffered']
    #allocation5 [shape = 's32[1]{0}', space=sflag, size = 0x4, scoped, tag = 'scoped memory for bert_forward.1']
    %16 = vsyncpa [#allocation3], 0
    %17 = vsyncpa [#allocation5], 0
    // Predicated region
    $region2: #{bert_forward.1} parent=1 // pred_check
      _
    $region3: #{bert_forward.1} parent=1 // pred_check_branch
      %19 = sbr.rel (0) target = $region5
    $region4: #{bert_forward.1} parent=1 // pred_region
      _
    $region5: #{bert_forward.1} parent=1 // pred_fallthru
      _
    // Predicated region
    $region6: #{bert_forward.1} parent=1 // pred_check
      _
    $region7: #{bert_forward.1} parent=1 // pred_check_branch
      %21 = sbr.rel (0) target = $region9
    $region8: #{bert_forward.1} parent=1 // pred_region
      _
    $region9: #{bert_forward.1} parent=1 // pred_fallthru
      _
    // Predicated region
    $region10: #{bert_forward.1} parent=1 // pred_check
      _
    $region11: #{bert_forward.1} parent=1 // pred_check_branch
      %23 = sbr.rel (0) target = $region13
    $region12: #{bert_forward.1} parent=1 // pred_region
      _
    $region13: #{bert_forward.1} parent=1 // pred_fallthru
      _
    // Predicated region
    $region14: #{bert_forward.1} parent=1 // pred_check
      _
    $region15: #{bert_forward.1} parent=1 // pred_check_branch
      %25 = sbr.rel (0) target = $region17
    $region16: #{bert_forward.1} parent=1 // pred_region
      _
    $region17: #{bert_forward.1} parent=1 // pred_fallthru
      _
    // Predicated region
    $region18: #{bert_forward.1} parent=1 // pred_check
      _
    $region19: #{bert_forward.1} parent=1 // pred_check_branch
      %27 = sbr.rel (0) target = $region21
    $region20: #{bert_forward.1} parent=1 // pred_region
      _
    $region21: #{bert_forward.1} parent=1 // pred_fallthru
      _
    // Predicated region
    $region22: #{bert_forward.1} parent=1 // pred_check
      _
    $region23: #{bert_forward.1} parent=1 // pred_check_branch
      %29 = sbr.rel (0) target = $region25
    $region24: #{bert_forward.1} parent=1 // pred_region
      _
    $region25: #{bert_forward.1} parent=1 // pred_fallthru
      _
    // Predicated region
    $region26: #{bert_forward.1} parent=1 // pred_check
      _
    $region27: #{bert_forward.1} parent=1 // pred_check_branch
      %31 = sbr.rel (0) target = $region29
    $region28: #{bert_forward.1} parent=1 // pred_region
      _
    $region29: #{bert_forward.1} parent=1 // pred_fallthru
      _
    // Predicated region
    $region30: #{bert_forward.1} parent=1 // pred_check
      _
    $region31: #{bert_forward.1} parent=1 // pred_check_branch
      %33 = sbr.rel (0) target = $region33
    $region32: #{bert_forward.1} parent=1 // pred_region
      _
    $region33: #{bert_forward.1} parent=1 // pred_fallthru
      _
    // Predicated region
    $region34: #{bert_forward.1} parent=1 // pred_check
      _
    $region35: #{bert_forward.1} parent=1 // pred_check_branch
      %35 = sbr.rel (0) target = $region37
    $region36: #{bert_forward.1} parent=1 // pred_region
      _
    $region37: #{bert_forward.1} parent=1 // pred_fallthru
      _
    %v37 = vld [vmem:[%s8] sm:$0xff]
    %v38 = vld [vmem:[%s8 + $0x10] sm:$0xff]
    %v39 = vld [vmem:[%s8 + $0x18] sm:$0xff]
    %v40 = vld [vmem:[%s8 + $0x20] sm:$0x1]
    %v41 = vld [vmem:[%s8 + $0x28] sm:$0x1]
    %v42 = vld [vmem:[%s2] sm:$0xff]
    %v43 = vld [vmem:[%s2 + $0x8] sm:$0xff]
    %v44 = vld [vmem:[%s0] sm:$0xff]
    %v45 = vld [vmem:[%s0 + $0x8] sm:$0xff]
    %vm46 = vcmask 261120
    %v47 = vsel %vm46, %v44, 0.0
    %48 = vadd.xlane.f32.xlu0 %v47
    %v49 = vpop.xlane.xlu0 %48
    %v50 = vsel %vm46, %v45, 0.0
    %51 = vadd.xlane.f32.xlu0 %v50
    %v52 = vpop.xlane.xlu0 %51
    %v53 = vrcp.pop 32.0
    %v54 = vmul.f32 %v49, %v53
    %v55 = vmul.f32 %v52, %v53
    %v56 = vsub.f32 %v44, %v54
    %v57 = vsub.f32 %v45, %v55
    %v58 = vmul.f32 %v56, %v56
    %v59 = vmul.f32 %v57, %v57
    %v60 = vsel %vm46, %v58, 0.0
    %61 = vadd.xlane.f32.xlu0 %v60
    %v62 = vpop.xlane.xlu0 %61
    %v63 = vsel %vm46, %v59, 0.0
    %64 = vadd.xlane.f32.xlu0 %v63
    %v65 = vpop.xlane.xlu0 %64
    %v66 = vmul.f32 %v62, %v53
    %v67 = vmul.f32 %v65, %v53
    %v68 = vadd.f32 %v66, 1e-12
    %v69 = vadd.f32 %v67, 1e-12
    %v70 = vrsqrt.pop %v68
    %v71 = vrsqrt.pop %v69
    %v72 = vmul.f32 %v56, %v70
    %v73 = vmul.f32 %v57, %v71
    %v74 = vlaneseq
    %v75 = vshrl.u32 %v74, 7
    %v76 = vsub.s32 0, %v75
    %v77 = vrot.slane %v37, %v76
    %v78 = vmul.f32 %v72, %v77
    %v79 = vmul.f32 %v73, %v77
    %v80 = vlaneseq
    %v81 = vshrl.u32 %v80, 7
    %v82 = vsub.s32 1, %v81
    %v83 = vrot.slane %v37, %v82
    %v84 = vadd.f32 %v78, %v83
    %v85 = vadd.f32 %v79, %v83
    %v86 = vld [vmem:[%s3] sm:$0xf]
    %v87 = vld [vmem:[%s3 + $0x4] sm:$0xf]
    %v88 = vld [vmem:[%s3 + $0x8] sm:$0xf]
    %v89 = vld [vmem:[%s3 + $0xc] sm:$0xf]
    %v90 = vpack.c.bf16 %v85, %v84
    %v91 = vlaneseq
    %v92 = vshrl.u32 %v91, 7
    %v93 = vsub.s32 7, %v92
    %v94 = vrot.slane %v38, %v93
    %v99 = vunpack.c.l.b16 %v86
    %v100 = vunpack.c.l.b16 %v87
    %v101 = vunpack.c.l.b16 %v88
    %v102 = vunpack.c.l.b16 %v89
    %v103 = vpack.c.b16 %v100, %v99
    %v104 = vpack.c.b16 %v102, %v101
    %v108 = vsel %vm46, %v90, 0
    %110 = vmatprep.subr.bf16.mxu0 0
    %111 = vmatpush1.bf16.msra.mxu0 0
    %112 = vmatprep.subr.bf16.mxu0 0
    %113 = vmatpush1.bf16.msra.mxu0 0
    %114 = vmatprep.subr.bf16.mxu0 0
    %115 = vmatpush1.bf16.msra.mxu0 0
    %116 = vmatprep.subr.bf16.mxu0 0
    %117 = vmatpush1.bf16.msra.mxu0 0
    %118 = vmatprep.subr.bf16.mxu0 0
    %119 = vmatpush1.bf16.msra.mxu0 0
    %120 = vmatprep.subr.bf16.mxu0 0
    %121 = vmatpush1.bf16.msra.mxu0 0
    %122 = vmatprep.subr.bf16.mxu0 0
    %123 = vmatpush1.bf16.msra.mxu0 %v104
    %124 = vmatprep.subr.bf16.mxu0 0
    %125 = vmatpush1.bf16.msra.mxu0 %v103
    %126 = vmatprep.subr.bf16.mxu0 0
    %127 = vmatpush2.bf16.msra.mxu0 0
    %128 = vmatprep.subr.bf16.mxu0 0
    %129 = vmatpush2.bf16.msra.mxu0 0
    %130 = vmatprep.subr.bf16.mxu0 0
    %131 = vmatpush2.bf16.msra.mxu0 0
    %132 = vmatprep.subr.bf16.mxu0 0
    %133 = vmatpush2.bf16.msra.mxu0 0
    %134 = vmatprep.subr.bf16.mxu0 0
    %135 = vmatpush2.bf16.msra.mxu0 0
    %136 = vmatprep.subr.bf16.mxu0 0
    %137 = vmatpush2.bf16.msra.mxu0 0
    %138 = vmatprep.subr.bf16.mxu0 0
    %139 = vmatpush2.bf16.msra.mxu0 0
    %140 = vmatprep.subr.bf16.mxu0 0
    %141 = vmatpush2.bf16.msra.mxu0 0
    %142 = vmatprep.mubr.bf16.mxu0 0
    %143 = vmatmul.mubr.bf16.gmra.mxu0 %v108
    %v144 = vpop.f32.mrf.mxu0
    %v145 = vadd.f32 %v94, %v144
    %v146 = vpop.f32.mrf.mxu0
    %v147 = vpop.f32.mrf.mxu0
    %v148 = vadd.f32 %v94, %v147
    %v149 = vpop.f32.mrf.mxu0
    %150 = vdwg.mxu0
    %v151 = vpack.c.bf16 %v148, %v145
    %153 = vrot.lane.b32.xlu0 %v151, 96
    %v154 = vpop.permute.xlu0 %153
    %vm155 = vcmask 130048
    %v157 = vsel %vm155, %v151, 0
    %v160 = vsel %vm155, %v154, 0
    %162 = vmatprep.subr.bf16.mxu0 0
    %163 = vmatpush1.bf16.xpose.msra.mxu0 0
    %164 = vmatprep.subr.bf16.mxu0 0
    %165 = vmatpush1.bf16.xpose.msra.mxu0 0
    %166 = vmatprep.subr.bf16.mxu0 0
    %167 = vmatpush1.bf16.xpose.msra.mxu0 0
    %168 = vmatprep.subr.bf16.mxu0 0
    %169 = vmatpush1.bf16.xpose.msra.mxu0 0
    %170 = vmatprep.subr.bf16.mxu0 0
    %171 = vmatpush1.bf16.xpose.msra.mxu0 0
    %172 = vmatprep.subr.bf16.mxu0 0
    %173 = vmatpush1.bf16.xpose.msra.mxu0 0
    %174 = vmatprep.subr.bf16.mxu0 0
    %175 = vmatpush1.bf16.xpose.msra.mxu0 0
    %176 = vmatprep.subr.bf16.mxu0 0
    %177 = vmatpush1.bf16.xpose.msra.mxu0 %v160
    %178 = vmatprep.subr.bf16.mxu0 0
    %179 = vmatpush2.bf16.xpose.msra.mxu0 0
    %180 = vmatprep.subr.bf16.mxu0 0
    %181 = vmatpush2.bf16.xpose.msra.mxu0 0
    %182 = vmatprep.subr.bf16.mxu0 0
    %183 = vmatpush2.bf16.xpose.msra.mxu0 0
    %184 = vmatprep.subr.bf16.mxu0 0
    %185 = vmatpush2.bf16.xpose.msra.mxu0 0
    %186 = vmatprep.subr.bf16.mxu0 0
    %187 = vmatpush2.bf16.xpose.msra.mxu0 0
    %188 = vmatprep.subr.bf16.mxu0 0
    %189 = vmatpush2.bf16.xpose.msra.mxu0 0
    %190 = vmatprep.subr.bf16.mxu0 0
    %191 = vmatpush2.bf16.xpose.msra.mxu0 0
    %192 = vmatprep.subr.bf16.mxu0 0
    %193 = vmatpush2.bf16.xpose.msra.mxu0 0
    %194 = vmatprep.mubr.bf16.mxu0 0
    %195 = vmatmul.mubr.bf16.gmra.mxu0 %v157
    %v196 = vpop.f32.mrf.mxu0
    %v197 = vadd.f32 0.0, %v196
    %v198 = vpop.f32.mrf.mxu0
    %v199 = vpop.f32.mrf.mxu0
    %v200 = vadd.f32 0.0, %v199
    %v201 = vpop.f32.mrf.mxu0
    %202 = vdwg.mxu0
    %v203 = vmul.f32 %v197, 0.25
    %v204 = vmul.f32 %v200, 0.25
    %v205 = vadd.f32 %v203, %v42
    %v206 = vadd.f32 %v204, %v43
    %v207 = vsel %vm155, %v205, -inf
    %208 = vmax.xlane.f32.xlu0 %v207
    %v209 = vpop.xlane.xlu0 %208
    %v210 = vsel %vm155, %v206, -inf
    %211 = vmax.xlane.f32.xlu0 %v210
    %v212 = vpop.xlane.xlu0 %211
    %v213 = vsub.f32 %v205, %v209
    %v214 = vsub.f32 %v206, %v212
    %v215 = vmul.f32 %v213, 1.442695
    %v216 = vpow.pop %v215
    %v217 = vmul.f32 %v214, 1.442695
    %v218 = vpow.pop %v217
    %v219 = vsel %vm155, %v216, 0.0
    %220 = vadd.xlane.f32.xlu0 %v219
    %v221 = vpop.xlane.xlu0 %220
    %v222 = vsel %vm155, %v218, 0.0
    %223 = vadd.xlane.f32.xlu0 %v222
    %v224 = vpop.xlane.xlu0 %223
    %v225 = vrcp.pop %v221
    %v226 = vrcp.pop %v224
    %v227 = vmul.f32 %v216, %v225
    %v228 = vmul.f32 %v218, %v226
    %v229 = vpack.c.bf16 %v228, %v227
    %230 = vrot.lane.b32.xlu0 %v151, 64
    %v231 = vpop.permute.xlu0 %230
    %v234 = vsel %vm155, %v229, 0
    %236 = vmatprep.subr.bf16.mxu0 0
    %237 = vmatpush1.bf16.msra.mxu0 0
    %238 = vmatprep.subr.bf16.mxu0 0
    %239 = vmatpush1.bf16.msra.mxu0 0
    %240 = vmatprep.subr.bf16.mxu0 0
    %241 = vmatpush1.bf16.msra.mxu0 0
    %242 = vmatprep.subr.bf16.mxu0 0
    %243 = vmatpush1.bf16.msra.mxu0 0
    %244 = vmatprep.subr.bf16.mxu0 0
    %245 = vmatpush1.bf16.msra.mxu0 0
    %246 = vmatprep.subr.bf16.mxu0 0
    %247 = vmatpush1.bf16.msra.mxu0 0
    %248 = vmatprep.subr.bf16.mxu0 0
    %249 = vmatpush1.bf16.msra.mxu0 0
    %250 = vmatprep.subr.bf16.mxu0 0
    %251 = vmatpush1.bf16.msra.mxu0 %v231
    %252 = vmatprep.subr.bf16.mxu0 0
    %253 = vmatpush2.bf16.msra.mxu0 0
    %254 = vmatprep.subr.bf16.mxu0 0
    %255 = vmatpush2.bf16.msra.mxu0 0
    %256 = vmatprep.subr.bf16.mxu0 0
    %257 = vmatpush2.bf16.msra.mxu0 0
    %258 = vmatprep.subr.bf16.mxu0 0
    %259 = vmatpush2.bf16.msra.mxu0 0
    %260 = vmatprep.subr.bf16.mxu0 0
    %261 = vmatpush2.bf16.msra.mxu0 0
    %262 = vmatprep.subr.bf16.mxu0 0
    %263 = vmatpush2.bf16.msra.mxu0 0
    %264 = vmatprep.subr.bf16.mxu0 0
    %265 = vmatpush2.bf16.msra.mxu0 0
    %266 = vmatprep.subr.bf16.mxu0 0
    %267 = vmatpush2.bf16.msra.mxu0 0
    %268 = vmatprep.mubr.bf16.mxu0 0
    %269 = vmatmul.mubr.bf16.gmra.mxu0 %v234
    %v270 = vpop.f32.mrf.mxu0
    %v271 = vadd.f32 0.0, %v270
    %v272 = vpop.f32.mrf.mxu0
    %v273 = vpop.f32.mrf.mxu0
    %v274 = vadd.f32 0.0, %v273
    %v275 = vpop.f32.mrf.mxu0
    %276 = vdwg.mxu0
    %277 = vrot.lane.b32.xlu0 %v151, 112
    %v278 = vpop.permute.xlu0 %277
    %279 = vrot.lane.b32.xlu0 %v151, 80
    %v280 = vpop.permute.xlu0 %279
    %v282 = vsel %vm155, %v278, 0
    %v285 = vsel %vm155, %v280, 0
    %287 = vmatprep.subr.bf16.mxu0 0
    %288 = vmatpush1.bf16.xpose.msra.mxu0 0
    %289 = vmatprep.subr.bf16.mxu0 0
    %290 = vmatpush1.bf16.xpose.msra.mxu0 0
    %291 = vmatprep.subr.bf16.mxu0 0
    %292 = vmatpush1.bf16.xpose.msra.mxu0 0
    %293 = vmatprep.subr.bf16.mxu0 0
    %294 = vmatpush1.bf16.xpose.msra.mxu0 0
    %295 = vmatprep.subr.bf16.mxu0 0
    %296 = vmatpush1.bf16.xpose.msra.mxu0 0
    %297 = vmatprep.subr.bf16.mxu0 0
    %298 = vmatpush1.bf16.xpose.msra.mxu0 0
    %299 = vmatprep.subr.bf16.mxu0 0
    %300 = vmatpush1.bf16.xpose.msra.mxu0 0
    %301 = vmatprep.subr.bf16.mxu0 0
    %302 = vmatpush1.bf16.xpose.msra.mxu0 %v285
    %303 = vmatprep.subr.bf16.mxu0 0
    %304 = vmatpush2.bf16.xpose.msra.mxu0 0
    %305 = vmatprep.subr.bf16.mxu0 0
    %306 = vmatpush2.bf16.xpose.msra.mxu0 0
    %307 = vmatprep.subr.bf16.mxu0 0
    %308 = vmatpush2.bf16.xpose.msra.mxu0 0
    %309 = vmatprep.subr.bf16.mxu0 0
    %310 = vmatpush2.bf16.xpose.msra.mxu0 0
    %311 = vmatprep.subr.bf16.mxu0 0
    %312 = vmatpush2.bf16.xpose.msra.mxu0 0
    %313 = vmatprep.subr.bf16.mxu0 0
    %314 = vmatpush2.bf16.xpose.msra.mxu0 0
    %315 = vmatprep.subr.bf16.mxu0 0
    %316 = vmatpush2.bf16.xpose.msra.mxu0 0
    %317 = vmatprep.subr.bf16.mxu0 0
    %318 = vmatpush2.bf16.xpose.msra.mxu0 0
    %319 = vmatprep.mubr.bf16.mxu0 0
    %320 = vmatmul.mubr.bf16.gmra.mxu0 %v282
    %v321 = vpop.f32.mrf.mxu0
    %v322 = vadd.f32 0.0, %v321
    %v323 = vpop.f32.mrf.mxu0
    %v324 = vpop.f32.mrf.mxu0
    %v325 = vadd.f32 0.0, %v324
    %v326 = vpop.f32.mrf.mxu0
    %327 = vdwg.mxu0
    %v328 = vmul.f32 %v322, 0.25
    %v329 = vmul.f32 %v325, 0.25
    %v330 = vadd.f32 %v328, %v42
    %v331 = vadd.f32 %v329, %v43
    %v332 = vsel %vm155, %v330, -inf
    %333 = vmax.xlane.f32.xlu0 %v332
    %v334 = vpop.xlane.xlu0 %333
    %v335 = vsel %vm155, %v331, -inf
    %336 = vmax.xlane.f32.xlu0 %v335
    %v337 = vpop.xlane.xlu0 %336
    %v338 = vsub.f32 %v330, %v334
    %v339 = vsub.f32 %v331, %v337
    %v340 = vmul.f32 %v338, 1.442695
    %v341 = vpow.pop %v340
    %v342 = vmul.f32 %v339, 1.442695
    %v343 = vpow.pop %v342
    %v344 = vsel %vm155, %v341, 0.0
    %345 = vadd.xlane.f32.xlu0 %v344
    %v346 = vpop.xlane.xlu0 %345
    %v347 = vsel %vm155, %v343, 0.0
    %348 = vadd.xlane.f32.xlu0 %v347
    %v349 = vpop.xlane.xlu0 %348
    %v350 = vrcp.pop %v346
    %v351 = vrcp.pop %v349
    %v352 = vmul.f32 %v341, %v350
    %v353 = vmul.f32 %v343, %v351
    %v354 = vpack.c.bf16 %v353, %v352
    %355 = vrot.lane.b32.xlu0 %v151, 48
    %v356 = vpop.permute.xlu0 %355
    %v359 = vsel %vm155, %v354, 0
    %361 = vmatprep.subr.bf16.mxu0 0
    %362 = vmatpush1.bf16.msra.mxu0 0
    %363 = vmatprep.subr.bf16.mxu0 0
    %364 = vmatpush1.bf16.msra.mxu0 0
    %365 = vmatprep.subr.bf16.mxu0 0
    %366 = vmatpush1.bf16.msra.mxu0 0
    %367 = vmatprep.subr.bf16.mxu0 0
    %368 = vmatpush1.bf16.msra.mxu0 0
    %369 = vmatprep.subr.bf16.mxu0 0
    %370 = vmatpush1.bf16.msra.mxu0 0
    %371 = vmatprep.subr.bf16.mxu0 0
    %372 = vmatpush1.bf16.msra.mxu0 0
    %373 = vmatprep.subr.bf16.mxu0 0
    %374 = vmatpush1.bf16.msra.mxu0 0
    %375 = vmatprep.subr.bf16.mxu0 0
    %376 = vmatpush1.bf16.msra.mxu0 %v356
    %377 = vmatprep.subr.bf16.mxu0 0
    %378 = vmatpush2.bf16.msra.mxu0 0
    %379 = vmatprep.subr.bf16.mxu0 0
    %380 = vmatpush2.bf16.msra.mxu0 0
    %381 = vmatprep.subr.bf16.mxu0 0
    %382 = vmatpush2.bf16.msra.mxu0 0
    %383 = vmatprep.subr.bf16.mxu0 0
    %384 = vmatpush2.bf16.msra.mxu0 0
    %385 = vmatprep.subr.bf16.mxu0 0
    %386 = vmatpush2.bf16.msra.mxu0 0
    %387 = vmatprep.subr.bf16.mxu0 0
    %388 = vmatpush2.bf16.msra.mxu0 0
    %389 = vmatprep.subr.bf16.mxu0 0
    %390 = vmatpush2.bf16.msra.mxu0 0
    %391 = vmatprep.subr.bf16.mxu0 0
    %392 = vmatpush2.bf16.msra.mxu0 0
    %393 = vmatprep.mubr.bf16.mxu0 0
    %394 = vmatmul.mubr.bf16.gmra.mxu0 %v359
    %v395 = vpop.f32.mrf.mxu0
    %v396 = vadd.f32 0.0, %v395
    %v397 = vpop.f32.mrf.mxu0
    %v398 = vpop.f32.mrf.mxu0
    %v399 = vadd.f32 0.0, %v398
    %v400 = vpop.f32.mrf.mxu0
    %401 = vdwg.mxu0
    %404 = vrot.lane.b32.xlu0 %v396, 16
    %v405 = vpop.permute.xlu0 %404
    %406 = vrot.lane.b32.xlu0 %v399, 16
    %v407 = vpop.permute.xlu0 %406
    %v410 = vsel %vm155, %v271, %v405
    %v411 = vsel %vm155, %v274, %v407
    %v412 = vld [vmem:[%s4] sm:$0xf]
    %v413 = vld [vmem:[%s4 + $0x4] sm:$0xf]
    %v414 = vld [vmem:[%s4 + $0x8] sm:$0xf]
    %v415 = vld [vmem:[%s4 + $0xc] sm:$0xf]
    %v416 = vpack.c.bf16 %v411, %v410
    %v417 = vlaneseq
    %v418 = vshrl.u32 %v417, 7
    %v419 = vsub.s32 2, %v418
    %v420 = vrot.slane %v37, %v419
    %v425 = vunpack.c.l.b16 %v412
    %v426 = vunpack.c.l.b16 %v413
    %v427 = vunpack.c.l.b16 %v414
    %v428 = vunpack.c.l.b16 %v415
    %v429 = vpack.c.b16 %v426, %v425
    %v430 = vpack.c.b16 %v428, %v427
    %v434 = vsel %vm46, %v416, 0
    %436 = vmatprep.subr.bf16.mxu0 0
    %437 = vmatpush1.bf16.msra.mxu0 0
    %438 = vmatprep.subr.bf16.mxu0 0
    %439 = vmatpush1.bf16.msra.mxu0 0
    %440 = vmatprep.subr.bf16.mxu0 0
    %441 = vmatpush1.bf16.msra.mxu0 0
    %442 = vmatprep.subr.bf16.mxu0 0
    %443 = vmatpush1.bf16.msra.mxu0 0
    %444 = vmatprep.subr.bf16.mxu0 0
    %445 = vmatpush1.bf16.msra.mxu0 0
    %446 = vmatprep.subr.bf16.mxu0 0
    %447 = vmatpush1.bf16.msra.mxu0 0
    %448 = vmatprep.subr.bf16.mxu0 0
    %449 = vmatpush1.bf16.msra.mxu0 %v430
    %450 = vmatprep.subr.bf16.mxu0 0
    %451 = vmatpush1.bf16.msra.mxu0 %v429
    %452 = vmatprep.subr.bf16.mxu0 0
    %453 = vmatpush2.bf16.msra.mxu0 0
    %454 = vmatprep.subr.bf16.mxu0 0
    %455 = vmatpush2.bf16.msra.mxu0 0
    %456 = vmatprep.subr.bf16.mxu0 0
    %457 = vmatpush2.bf16.msra.mxu0 0
    %458 = vmatprep.subr.bf16.mxu0 0
    %459 = vmatpush2.bf16.msra.mxu0 0
    %460 = vmatprep.subr.bf16.mxu0 0
    %461 = vmatpush2.bf16.msra.mxu0 0
    %462 = vmatprep.subr.bf16.mxu0 0
    %463 = vmatpush2.bf16.msra.mxu0 0
    %464 = vmatprep.subr.bf16.mxu0 0
    %465 = vmatpush2.bf16.msra.mxu0 0
    %466 = vmatprep.subr.bf16.mxu0 0
    %467 = vmatpush2.bf16.msra.mxu0 0
    %468 = vmatprep.mubr.bf16.mxu0 0
    %469 = vmatmul.mubr.bf16.gmra.mxu0 %v434
    %v470 = vpop.f32.mrf.mxu0
    %v471 = vadd.f32 %v420, %v470
    %v472 = vpop.f32.mrf.mxu0
    %v473 = vpop.f32.mrf.mxu0
    %v474 = vadd.f32 %v420, %v473
    %v475 = vpop.f32.mrf.mxu0
    %476 = vdwg.mxu0
    %v477 = vadd.f32 %v471, %v84
    %v478 = vadd.f32 %v474, %v85
    %v479 = vsel %vm46, %v477, 0.0
    %480 = vadd.xlane.f32.xlu0 %v479
    %v481 = vpop.xlane.xlu0 %480
    %v482 = vsel %vm46, %v478, 0.0
    %483 = vadd.xlane.f32.xlu0 %v482
    %v484 = vpop.xlane.xlu0 %483
    %v485 = vmul.f32 %v481, %v53
    %v486 = vmul.f32 %v484, %v53
    %v487 = vsub.f32 %v477, %v485
    %v488 = vsub.f32 %v478, %v486
    %v489 = vmul.f32 %v487, %v487
    %v490 = vmul.f32 %v488, %v488
    %v491 = vsel %vm46, %v489, 0.0
    %492 = vadd.xlane.f32.xlu0 %v491
    %v493 = vpop.xlane.xlu0 %492
    %v494 = vsel %vm46, %v490, 0.0
    %495 = vadd.xlane.f32.xlu0 %v494
    %v496 = vpop.xlane.xlu0 %495
    %v497 = vmul.f32 %v493, %v53
    %v498 = vmul.f32 %v496, %v53
    %v499 = vadd.f32 %v497, 1e-12
    %v500 = vadd.f32 %v498, 1e-12
    %v501 = vrsqrt.pop %v499
    %v502 = vrsqrt.pop %v500
    %v503 = vmul.f32 %v487, %v501
    %v504 = vmul.f32 %v488, %v502
    %v505 = vlaneseq
    %v506 = vshrl.u32 %v505, 7
    %v507 = vsub.s32 3, %v506
    %v508 = vrot.slane %v37, %v507
    %v509 = vmul.f32 %v503, %v508
    %v510 = vmul.f32 %v504, %v508
    %v511 = vlaneseq
    %v512 = vshrl.u32 %v511, 7
    %v513 = vsub.s32 4, %v512
    %v514 = vrot.slane %v37, %v513
    %v515 = vadd.f32 %v509, %v514
    %v516 = vadd.f32 %v510, %v514
    %v517 = vld [vmem:[%s5] sm:$0xf]
    %v518 = vld [vmem:[%s5 + $0x4] sm:$0xf]
    %v519 = vld [vmem:[%s5 + $0x8] sm:$0xf]
    %v520 = vld [vmem:[%s5 + $0xc] sm:$0xf]
    %v521 = vpack.c.bf16 %v516, %v515
    %v522 = vlaneseq
    %v523 = vshrl.u32 %v522, 7
    %v524 = vsub.s32 7, %v523
    %v525 = vrot.slane %v39, %v524
    %v530 = vunpack.c.l.b16 %v517
    %v531 = vunpack.c.l.b16 %v518
    %v532 = vunpack.c.l.b16 %v519
    %v533 = vunpack.c.l.b16 %v520
    %v534 = vpack.c.b16 %v531, %v530
    %v535 = vpack.c.b16 %v533, %v532
    %540 = vrot.lane.b32.xlu0 %v94, 32
    %v541 = vpop.permute.xlu0 %540
    %542 = vrot.lane.b32.xlu0 %v525, 32
    %v543 = vpop.permute.xlu0 %542
    %v544 = vsel %vm46, %v541, %v543
    %v547 = vsel %vm46, %v521, 0
    %549 = vmatprep.subr.bf16.mxu0 0
    %550 = vmatpush1.bf16.msra.mxu0 0
    %551 = vmatprep.subr.bf16.mxu0 0
    %552 = vmatpush1.bf16.msra.mxu0 0
    %553 = vmatprep.subr.bf16.mxu0 0
    %554 = vmatpush1.bf16.msra.mxu0 0
    %555 = vmatprep.subr.bf16.mxu0 0
    %556 = vmatpush1.bf16.msra.mxu0 0
    %557 = vmatprep.subr.bf16.mxu0 0
    %558 = vmatpush1.bf16.msra.mxu0 0
    %559 = vmatprep.subr.bf16.mxu0 0
    %560 = vmatpush1.bf16.msra.mxu0 0
    %561 = vmatprep.subr.bf16.mxu0 0
    %562 = vmatpush1.bf16.msra.mxu0 %v535
    %563 = vmatprep.subr.bf16.mxu0 0
    %564 = vmatpush1.bf16.msra.mxu0 %v534
    %565 = vmatprep.subr.bf16.mxu0 0
    %566 = vmatpush2.bf16.msra.mxu0 0
    %567 = vmatprep.subr.bf16.mxu0 0
    %568 = vmatpush2.bf16.msra.mxu0 0
    %569 = vmatprep.subr.bf16.mxu0 0
    %570 = vmatpush2.bf16.msra.mxu0 0
    %571 = vmatprep.subr.bf16.mxu0 0
    %572 = vmatpush2.bf16.msra.mxu0 0
    %573 = vmatprep.subr.bf16.mxu0 0
    %574 = vmatpush2.bf16.msra.mxu0 0
    %575 = vmatprep.subr.bf16.mxu0 0
    %576 = vmatpush2.bf16.msra.mxu0 0
    %577 = vmatprep.subr.bf16.mxu0 0
    %578 = vmatpush2.bf16.msra.mxu0 0
    %579 = vmatprep.subr.bf16.mxu0 0
    %580 = vmatpush2.bf16.msra.mxu0 0
    %581 = vmatprep.mubr.bf16.mxu0 0
    %582 = vmatmul.mubr.bf16.gmra.mxu0 %v547
    %v583 = vpop.f32.mrf.mxu0
    %v584 = vadd.f32 %v544, %v583
    %v585 = vpop.f32.mrf.mxu0
    %v586 = vpop.f32.mrf.mxu0
    %v587 = vadd.f32 %v544, %v586
    %v588 = vpop.f32.mrf.mxu0
    %589 = vdwg.mxu0
    %v590 = vmul.f32 %v584, 0.5
    %v591 = vmul.f32 %v587, 0.5
    %v592 = vmul.f32 %v584, 0.044715
    %v593 = vmul.f32 %v587, 0.044715
    %v594 = vmul.f32 %v592, %v584
    %v595 = vmul.f32 %v593, %v587
    %v596 = vmul.f32 %v594, %v584
    %v597 = vmul.f32 %v595, %v587
    %v598 = vadd.f32 %v584, %v596
    %v599 = vadd.f32 %v587, %v597
    %v600 = vmul.f32 %v598, 0.7978846
    %v601 = vmul.f32 %v599, 0.7978846
    %v602 = vtanh.pop %v600
    %v603 = vtanh.pop %v601
    %v604 = vadd.f32 %v602, 1.0
    %v605 = vadd.f32 %v603, 1.0
    %v606 = vmul.f32 %v590, %v604
    %v607 = vmul.f32 %v591, %v605
    %v608 = vld [vmem:[%s6] sm:$0xf]
    %v609 = vld [vmem:[%s6 + $0x4] sm:$0xf]
    %v610 = vld [vmem:[%s6 + $0x8] sm:$0xf]
    %v611 = vld [vmem:[%s6 + $0xc] sm:$0xf]
    %v612 = vld [vmem:[%s6 + $0x10] sm:$0xf]
    %v613 = vld [vmem:[%s6 + $0x14] sm:$0xf]
    %v614 = vld [vmem:[%s6 + $0x18] sm:$0xf]
    %v615 = vld [vmem:[%s6 + $0x1c] sm:$0xf]
    %v616 = vpack.c.bf16 %v607, %v606
    %v617 = vlaneseq
    %v618 = vshrl.u32 %v617, 7
    %v619 = vsub.s32 5, %v618
    %v620 = vrot.slane %v37, %v619
    %v629 = vunpack.c.l.b16 %v608
    %v630 = vunpack.c.l.b16 %v609
    %v631 = vunpack.c.l.b16 %v610
    %v632 = vunpack.c.l.b16 %v611
    %v633 = vunpack.c.l.b16 %v612
    %v634 = vunpack.c.l.b16 %v613
    %v635 = vunpack.c.l.b16 %v614
    %v636 = vunpack.c.l.b16 %v615
    %v637 = vpack.c.b16 %v630, %v629
    %v638 = vpack.c.b16 %v632, %v631
    %v639 = vpack.c.b16 %v634, %v633
    %v640 = vpack.c.b16 %v636, %v635
    %vm645 = vcmask 523264
    %v647 = vsel %vm645, %v616, 0
    %649 = vmatprep.subr.bf16.mxu0 0
    %650 = vmatpush1.bf16.msra.mxu0 0
    %651 = vmatprep.subr.bf16.mxu0 0
    %652 = vmatpush1.bf16.msra.mxu0 0
    %653 = vmatprep.subr.bf16.mxu0 0
    %654 = vmatpush1.bf16.msra.mxu0 0
    %655 = vmatprep.subr.bf16.mxu0 0
    %656 = vmatpush1.bf16.msra.mxu0 0
    %657 = vmatprep.subr.bf16.mxu0 0
    %658 = vmatpush1.bf16.msra.mxu0 %v640
    %659 = vmatprep.subr.bf16.mxu0 0
    %660 = vmatpush1.bf16.msra.mxu0 %v639
    %661 = vmatprep.subr.bf16.mxu0 0
    %662 = vmatpush1.bf16.msra.mxu0 %v638
    %663 = vmatprep.subr.bf16.mxu0 0
    %664 = vmatpush1.bf16.msra.mxu0 %v637
    %665 = vmatprep.subr.bf16.mxu0 0
    %666 = vmatpush2.bf16.msra.mxu0 0
    %667 = vmatprep.subr.bf16.mxu0 0
    %668 = vmatpush2.bf16.msra.mxu0 0
    %669 = vmatprep.subr.bf16.mxu0 0
    %670 = vmatpush2.bf16.msra.mxu0 0
    %671 = vmatprep.subr.bf16.mxu0 0
    %672 = vmatpush2.bf16.msra.mxu0 0
    %673 = vmatprep.subr.bf16.mxu0 0
    %674 = vmatpush2.bf16.msra.mxu0 0
    %675 = vmatprep.subr.bf16.mxu0 0
    %676 = vmatpush2.bf16.msra.mxu0 0
    %677 = vmatprep.subr.bf16.mxu0 0
    %678 = vmatpush2.bf16.msra.mxu0 0
    %679 = vmatprep.subr.bf16.mxu0 0
    %680 = vmatpush2.bf16.msra.mxu0 0
    %681 = vmatprep.mubr.bf16.mxu0 0
    %682 = vmatmul.mubr.bf16.gmra.mxu0 %v647
    %v683 = vpop.f32.mrf.mxu0
    %v684 = vadd.f32 %v620, %v683
    %v685 = vpop.f32.mrf.mxu0
    %v686 = vpop.f32.mrf.mxu0
    %v687 = vadd.f32 %v620, %v686
    %v688 = vpop.f32.mrf.mxu0
    %689 = vdwg.mxu0
    %v690 = vadd.f32 %v684, %v515
    %v691 = vadd.f32 %v687, %v516
    %v692 = vsel %vm46, %v690, 0.0
    %693 = vadd.xlane.f32.xlu0 %v692
    %v694 = vpop.xlane.xlu0 %693
    %v695 = vsel %vm46, %v691, 0.0
    %696 = vadd.xlane.f32.xlu0 %v695
    %v697 = vpop.xlane.xlu0 %696
    %v698 = vmul.f32 %v694, %v53
    %v699 = vmul.f32 %v697, %v53
    %v700 = vsub.f32 %v690, %v698
    %v701 = vsub.f32 %v691, %v699
    %v702 = vmul.f32 %v700, %v700
    %v703 = vmul.f32 %v701, %v701
    %v704 = vsel %vm46, %v702, 0.0
    %705 = vadd.xlane.f32.xlu0 %v704
    %v706 = vpop.xlane.xlu0 %705
    %v707 = vsel %vm46, %v703, 0.0
    %708 = vadd.xlane.f32.xlu0 %v707
    %v709 = vpop.xlane.xlu0 %708
    %v710 = vmul.f32 %v706, %v53
    %v711 = vmul.f32 %v709, %v53
    %v712 = vadd.f32 %v710, 1e-12
    %v713 = vadd.f32 %v711, 1e-12
    %v714 = vrsqrt.pop %v712
    %v715 = vrsqrt.pop %v713
    %v716 = vmul.f32 %v700, %v714
    %v717 = vmul.f32 %v701, %v715
    %v718 = vlaneseq
    %v719 = vshrl.u32 %v718, 7
    %v720 = vsub.s32 6, %v719
    %v721 = vrot.slane %v37, %v720
    %v722 = vmul.f32 %v716, %v721
    %v723 = vmul.f32 %v717, %v721
    %v724 = vlaneseq
    %v725 = vshrl.u32 %v724, 7
    %v726 = vsub.s32 7, %v725
    %v727 = vrot.slane %v37, %v726
    %v728 = vadd.f32 %v722, %v727
    %v729 = vadd.f32 %v723, %v727
    %s730 = scalar_lea.vmem %s3, 16
    %v731 = vld [vmem:[%s730] sm:$0xf]
    %v732 = vld [vmem:[%s730 + $0x4] sm:$0xf]
    %v733 = vld [vmem:[%s730 + $0x8] sm:$0xf]
    %v734 = vld [vmem:[%s730 + $0xc] sm:$0xf]
    %v735 = vpack.c.bf16 %v729, %v728
    %v736 = vlaneseq
    %v737 = vshrl.u32 %v736, 7
    %v738 = vsub.s32 0, %v737
    %v739 = vrot.slane %v40, %v738
    %v744 = vunpack.c.l.b16 %v731
    %v745 = vunpack.c.l.b16 %v732
    %v746 = vunpack.c.l.b16 %v733
    %v747 = vunpack.c.l.b16 %v734
    %v748 = vpack.c.b16 %v745, %v744
    %v749 = vpack.c.b16 %v747, %v746
    %v753 = vsel %vm46, %v735, 0
    %755 = vmatprep.subr.bf16.mxu0 0
    %756 = vmatpush1.bf16.msra.mxu0 0
    %757 = vmatprep.subr.bf16.mxu0 0
    %758 = vmatpush1.bf16.msra.mxu0 0
    %759 = vmatprep.subr.bf16.mxu0 0
    %760 = vmatpush1.bf16.msra.mxu0 0
    %761 = vmatprep.subr.bf16.mxu0 0
    %762 = vmatpush1.bf16.msra.mxu0 0
    %763 = vmatprep.subr.bf16.mxu0 0
    %764 = vmatpush1.bf16.msra.mxu0 0
    %765 = vmatprep.subr.bf16.mxu0 0
    %766 = vmatpush1.bf16.msra.mxu0 0
    %767 = vmatprep.subr.bf16.mxu0 0
    %768 = vmatpush1.bf16.msra.mxu0 %v749
    %769 = vmatprep.subr.bf16.mxu0 0
    %770 = vmatpush1.bf16.msra.mxu0 %v748
    %771 = vmatprep.subr.bf16.mxu0 0
    %772 = vmatpush2.bf16.msra.mxu0 0
    %773 = vmatprep.subr.bf16.mxu0 0
    %774 = vmatpush2.bf16.msra.mxu0 0
    %775 = vmatprep.subr.bf16.mxu0 0
    %776 = vmatpush2.bf16.msra.mxu0 0
    %777 = vmatprep.subr.bf16.mxu0 0
    %778 = vmatpush2.bf16.msra.mxu0 0
    %779 = vmatprep.subr.bf16.mxu0 0
    %780 = vmatpush2.bf16.msra.mxu0 0
    %781 = vmatprep.subr.bf16.mxu0 0
    %782 = vmatpush2.bf16.msra.mxu0 0
    %783 = vmatprep.subr.bf16.mxu0 0
    %784 = vmatpush2.bf16.msra.mxu0 0
    %785 = vmatprep.subr.bf16.mxu0 0
    %786 = vmatpush2.bf16.msra.mxu0 0
    %787 = vmatprep.mubr.bf16.mxu0 0
    %788 = vmatmul.mubr.bf16.gmra.mxu0 %v753
    %v789 = vpop.f32.mrf.mxu0
    %v790 = vadd.f32 %v739, %v789
    %v791 = vpop.f32.mrf.mxu0
    %v792 = vpop.f32.mrf.mxu0
    %v793 = vadd.f32 %v739, %v792
    %v794 = vpop.f32.mrf.mxu0
    %795 = vdwg.mxu0
    %v796 = vpack.c.bf16 %v793, %v790
    %798 = vrot.lane.b32.xlu0 %v796, 96
    %v799 = vpop.permute.xlu0 %798
    %v801 = vsel %vm155, %v796, 0
    %v804 = vsel %vm155, %v799, 0
    %806 = vmatprep.subr.bf16.mxu0 0
    %807 = vmatpush1.bf16.xpose.msra.mxu0 0
    %808 = vmatprep.subr.bf16.mxu0 0
    %809 = vmatpush1.bf16.xpose.msra.mxu0 0
    %810 = vmatprep.subr.bf16.mxu0 0
    %811 = vmatpush1.bf16.xpose.msra.mxu0 0
    %812 = vmatprep.subr.bf16.mxu0 0
    %813 = vmatpush1.bf16.xpose.msra.mxu0 0
    %814 = vmatprep.subr.bf16.mxu0 0
    %815 = vmatpush1.bf16.xpose.msra.mxu0 0
    %816 = vmatprep.subr.bf16.mxu0 0
    %817 = vmatpush1.bf16.xpose.msra.mxu0 0
    %818 = vmatprep.subr.bf16.mxu0 0
    %819 = vmatpush1.bf16.xpose.msra.mxu0 0
    %820 = vmatprep.subr.bf16.mxu0 0
    %821 = vmatpush1.bf16.xpose.msra.mxu0 %v804
    %822 = vmatprep.subr.bf16.mxu0 0
    %823 = vmatpush2.bf16.xpose.msra.mxu0 0
    %824 = vmatprep.subr.bf16.mxu0 0
    %825 = vmatpush2.bf16.xpose.msra.mxu0 0
    %826 = vmatprep.subr.bf16.mxu0 0
    %827 = vmatpush2.bf16.xpose.msra.mxu0 0
    %828 = vmatprep.subr.bf16.mxu0 0
    %829 = vmatpush2.bf16.xpose.msra.mxu0 0
    %830 = vmatprep.subr.bf16.mxu0 0
    %831 = vmatpush2.bf16.xpose.msra.mxu0 0
    %832 = vmatprep.subr.bf16.mxu0 0
    %833 = vmatpush2.bf16.xpose.msra.mxu0 0
    %834 = vmatprep.subr.bf16.mxu0 0
    %835 = vmatpush2.bf16.xpose.msra.mxu0 0
    %836 = vmatprep.subr.bf16.mxu0 0
    %837 = vmatpush2.bf16.xpose.msra.mxu0 0
    %838 = vmatprep.mubr.bf16.mxu0 0
    %839 = vmatmul.mubr.bf16.gmra.mxu0 %v801
    %v840 = vpop.f32.mrf.mxu0
    %v841 = vadd.f32 0.0, %v840
    %v842 = vpop.f32.mrf.mxu0
    %v843 = vpop.f32.mrf.mxu0
    %v844 = vadd.f32 0.0, %v843
    %v845 = vpop.f32.mrf.mxu0
    %846 = vdwg.mxu0
    %v847 = vmul.f32 %v841, 0.25
    %v848 = vmul.f32 %v844, 0.25
    %v849 = vadd.f32 %v847, %v42
    %v850 = vadd.f32 %v848, %v43
    %v851 = vsel %vm155, %v849, -inf
    %852 = vmax.xlane.f32.xlu0 %v851
    %v853 = vpop.xlane.xlu0 %852
    %v854 = vsel %vm155, %v850, -inf
    %855 = vmax.xlane.f32.xlu0 %v854
    %v856 = vpop.xlane.xlu0 %855
    %v857 = vsub.f32 %v849, %v853
    %v858 = vsub.f32 %v850, %v856
    %v859 = vmul.f32 %v857, 1.442695
    %v860 = vpow.pop %v859
    %v861 = vmul.f32 %v858, 1.442695
    %v862 = vpow.pop %v861
    %v863 = vsel %vm155, %v860, 0.0
    %864 = vadd.xlane.f32.xlu0 %v863
    %v865 = vpop.xlane.xlu0 %864
    %v866 = vsel %vm155, %v862, 0.0
    %867 = vadd.xlane.f32.xlu0 %v866
    %v868 = vpop.xlane.xlu0 %867
    %v869 = vrcp.pop %v865
    %v870 = vrcp.pop %v868
    %v871 = vmul.f32 %v860, %v869
    %v872 = vmul.f32 %v862, %v870
    %v873 = vpack.c.bf16 %v872, %v871
    %874 = vrot.lane.b32.xlu0 %v796, 64
    %v875 = vpop.permute.xlu0 %874
    %v878 = vsel %vm155, %v873, 0
    %880 = vmatprep.subr.bf16.mxu0 0
    %881 = vmatpush1.bf16.msra.mxu0 0
    %882 = vmatprep.subr.bf16.mxu0 0
    %883 = vmatpush1.bf16.msra.mxu0 0
    %884 = vmatprep.subr.bf16.mxu0 0
    %885 = vmatpush1.bf16.msra.mxu0 0
    %886 = vmatprep.subr.bf16.mxu0 0
    %887 = vmatpush1.bf16.msra.mxu0 0
    %888 = vmatprep.subr.bf16.mxu0 0
    %889 = vmatpush1.bf16.msra.mxu0 0
    %890 = vmatprep.subr.bf16.mxu0 0
    %891 = vmatpush1.bf16.msra.mxu0 0
    %892 = vmatprep.subr.bf16.mxu0 0
    %893 = vmatpush1.bf16.msra.mxu0 0
    %894 = vmatprep.subr.bf16.mxu0 0
    %895 = vmatpush1.bf16.msra.mxu0 %v875
    %896 = vmatprep.subr.bf16.mxu0 0
    %897 = vmatpush2.bf16.msra.mxu0 0
    %898 = vmatprep.subr.bf16.mxu0 0
    %899 = vmatpush2.bf16.msra.mxu0 0
    %900 = vmatprep.subr.bf16.mxu0 0
    %901 = vmatpush2.bf16.msra.mxu0 0
    %902 = vmatprep.subr.bf16.mxu0 0
    %903 = vmatpush2.bf16.msra.mxu0 0
    %904 = vmatprep.subr.bf16.mxu0 0
    %905 = vmatpush2.bf16.msra.mxu0 0
    %906 = vmatprep.subr.bf16.mxu0 0
    %907 = vmatpush2.bf16.msra.mxu0 0
    %908 = vmatprep.subr.bf16.mxu0 0
    %909 = vmatpush2.bf16.msra.mxu0 0
    %910 = vmatprep.subr.bf16.mxu0 0
    %911 = vmatpush2.bf16.msra.mxu0 0
    %912 = vmatprep.mubr.bf16.mxu0 0
    %913 = vmatmul.mubr.bf16.gmra.mxu0 %v878
    %v914 = vpop.f32.mrf.mxu0
    %v915 = vadd.f32 0.0, %v914
    %v916 = vpop.f32.mrf.mxu0
    %v917 = vpop.f32.mrf.mxu0
    %v918 = vadd.f32 0.0, %v917
    %v919 = vpop.f32.mrf.mxu0
    %920 = vdwg.mxu0
    %921 = vrot.lane.b32.xlu0 %v796, 112
    %v922 = vpop.permute.xlu0 %921
    %923 = vrot.lane.b32.xlu0 %v796, 80
    %v924 = vpop.permute.xlu0 %923
    %v926 = vsel %vm155, %v922, 0
    %v929 = vsel %vm155, %v924, 0
    %931 = vmatprep.subr.bf16.mxu0 0
    %932 = vmatpush1.bf16.xpose.msra.mxu0 0
    %933 = vmatprep.subr.bf16.mxu0 0
    %934 = vmatpush1.bf16.xpose.msra.mxu0 0
    %935 = vmatprep.subr.bf16.mxu0 0
    %936 = vmatpush1.bf16.xpose.msra.mxu0 0
    %937 = vmatprep.subr.bf16.mxu0 0
    %938 = vmatpush1.bf16.xpose.msra.mxu0 0
    %939 = vmatprep.subr.bf16.mxu0 0
    %940 = vmatpush1.bf16.xpose.msra.mxu0 0
    %941 = vmatprep.subr.bf16.mxu0 0
    %942 = vmatpush1.bf16.xpose.msra.mxu0 0
    %943 = vmatprep.subr.bf16.mxu0 0
    %944 = vmatpush1.bf16.xpose.msra.mxu0 0
    %945 = vmatprep.subr.bf16.mxu0 0
    %946 = vmatpush1.bf16.xpose.msra.mxu0 %v929
    %947 = vmatprep.subr.bf16.mxu0 0
    %948 = vmatpush2.bf16.xpose.msra.mxu0 0
    %949 = vmatprep.subr.bf16.mxu0 0
    %950 = vmatpush2.bf16.xpose.msra.mxu0 0
    %951 = vmatprep.subr.bf16.mxu0 0
    %952 = vmatpush2.bf16.xpose.msra.mxu0 0
    %953 = vmatprep.subr.bf16.mxu0 0
    %954 = vmatpush2.bf16.xpose.msra.mxu0 0
    %955 = vmatprep.subr.bf16.mxu0 0
    %956 = vmatpush2.bf16.xpose.msra.mxu0 0
    %957 = vmatprep.subr.bf16.mxu0 0
    %958 = vmatpush2.bf16.xpose.msra.mxu0 0
    %959 = vmatprep.subr.bf16.mxu0 0
    %960 = vmatpush2.bf16.xpose.msra.mxu0 0
    %961 = vmatprep.subr.bf16.mxu0 0
    %962 = vmatpush2.bf16.xpose.msra.mxu0 0
    %963 = vmatprep.mubr.bf16.mxu0 0
    %964 = vmatmul.mubr.bf16.gmra.mxu0 %v926
    %v965 = vpop.f32.mrf.mxu0
    %v966 = vadd.f32 0.0, %v965
    %v967 = vpop.f32.mrf.mxu0
    %v968 = vpop.f32.mrf.mxu0
    %v969 = vadd.f32 0.0, %v968
    %v970 = vpop.f32.mrf.mxu0
    %971 = vdwg.mxu0
    %v972 = vmul.f32 %v966, 0.25
    %v973 = vmul.f32 %v969, 0.25
    %v974 = vadd.f32 %v972, %v42
    %v975 = vadd.f32 %v973, %v43
    %v976 = vsel %vm155, %v974, -inf
    %977 = vmax.xlane.f32.xlu0 %v976
    %v978 = vpop.xlane.xlu0 %977
    %v979 = vsel %vm155, %v975, -inf
    %980 = vmax.xlane.f32.xlu0 %v979
    %v981 = vpop.xlane.xlu0 %980
    %v982 = vsub.f32 %v974, %v978
    %v983 = vsub.f32 %v975, %v981
    %v984 = vmul.f32 %v982, 1.442695
    %v985 = vpow.pop %v984
    %v986 = vmul.f32 %v983, 1.442695
    %v987 = vpow.pop %v986
    %v988 = vsel %vm155, %v985, 0.0
    %989 = vadd.xlane.f32.xlu0 %v988
    %v990 = vpop.xlane.xlu0 %989
    %v991 = vsel %vm155, %v987, 0.0
    %992 = vadd.xlane.f32.xlu0 %v991
    %v993 = vpop.xlane.xlu0 %992
    %v994 = vrcp.pop %v990
    %v995 = vrcp.pop %v993
    %v996 = vmul.f32 %v985, %v994
    %v997 = vmul.f32 %v987, %v995
    %v998 = vpack.c.bf16 %v997, %v996
    %999 = vrot.lane.b32.xlu0 %v796, 48
    %v1000 = vpop.permute.xlu0 %999
    %v1003 = vsel %vm155, %v998, 0
    %1005 = vmatprep.subr.bf16.mxu0 0
    %1006 = vmatpush1.bf16.msra.mxu0 0
    %1007 = vmatprep.subr.bf16.mxu0 0
    %1008 = vmatpush1.bf16.msra.mxu0 0
    %1009 = vmatprep.subr.bf16.mxu0 0
    %1010 = vmatpush1.bf16.msra.mxu0 0
    %1011 = vmatprep.subr.bf16.mxu0 0
    %1012 = vmatpush1.bf16.msra.mxu0 0
    %1013 = vmatprep.subr.bf16.mxu0 0
    %1014 = vmatpush1.bf16.msra.mxu0 0
    %1015 = vmatprep.subr.bf16.mxu0 0
    %1016 = vmatpush1.bf16.msra.mxu0 0
    %1017 = vmatprep.subr.bf16.mxu0 0
    %1018 = vmatpush1.bf16.msra.mxu0 0
    %1019 = vmatprep.subr.bf16.mxu0 0
    %1020 = vmatpush1.bf16.msra.mxu0 %v1000
    %1021 = vmatprep.subr.bf16.mxu0 0
    %1022 = vmatpush2.bf16.msra.mxu0 0
    %1023 = vmatprep.subr.bf16.mxu0 0
    %1024 = vmatpush2.bf16.msra.mxu0 0
    %1025 = vmatprep.subr.bf16.mxu0 0
    %1026 = vmatpush2.bf16.msra.mxu0 0
    %1027 = vmatprep.subr.bf16.mxu0 0
    %1028 = vmatpush2.bf16.msra.mxu0 0
    %1029 = vmatprep.subr.bf16.mxu0 0
    %1030 = vmatpush2.bf16.msra.mxu0 0
    %1031 = vmatprep.subr.bf16.mxu0 0
    %1032 = vmatpush2.bf16.msra.mxu0 0
    %1033 = vmatprep.subr.bf16.mxu0 0
    %1034 = vmatpush2.bf16.msra.mxu0 0
    %1035 = vmatprep.subr.bf16.mxu0 0
    %1036 = vmatpush2.bf16.msra.mxu0 0
    %1037 = vmatprep.mubr.bf16.mxu0 0
    %1038 = vmatmul.mubr.bf16.gmra.mxu0 %v1003
    %v1039 = vpop.f32.mrf.mxu0
    %v1040 = vadd.f32 0.0, %v1039
    %v1041 = vpop.f32.mrf.mxu0
    %v1042 = vpop.f32.mrf.mxu0
    %v1043 = vadd.f32 0.0, %v1042
    %v1044 = vpop.f32.mrf.mxu0
    %1045 = vdwg.mxu0
    %1048 = vrot.lane.b32.xlu0 %v1040, 16
    %v1049 = vpop.permute.xlu0 %1048
    %1050 = vrot.lane.b32.xlu0 %v1043, 16
    %v1051 = vpop.permute.xlu0 %1050
    %v1054 = vsel %vm155, %v915, %v1049
    %v1055 = vsel %vm155, %v918, %v1051
    %s1056 = scalar_lea.vmem %s4, 16
    %v1057 = vld [vmem:[%s1056] sm:$0xf]
    %v1058 = vld [vmem:[%s1056 + $0x4] sm:$0xf]
    %v1059 = vld [vmem:[%s1056 + $0x8] sm:$0xf]
    %v1060 = vld [vmem:[%s1056 + $0xc] sm:$0xf]
    %v1061 = vpack.c.bf16 %v1055, %v1054
    %v1062 = vlaneseq
    %v1063 = vshrl.u32 %v1062, 7
    %v1064 = vsub.s32 0, %v1063
    %v1065 = vrot.slane %v38, %v1064
    %v1070 = vunpack.c.l.b16 %v1057
    %v1071 = vunpack.c.l.b16 %v1058
    %v1072 = vunpack.c.l.b16 %v1059
    %v1073 = vunpack.c.l.b16 %v1060
    %v1074 = vpack.c.b16 %v1071, %v1070
    %v1075 = vpack.c.b16 %v1073, %v1072
    %v1079 = vsel %vm46, %v1061, 0
    %1081 = vmatprep.subr.bf16.mxu0 0
    %1082 = vmatpush1.bf16.msra.mxu0 0
    %1083 = vmatprep.subr.bf16.mxu0 0
    %1084 = vmatpush1.bf16.msra.mxu0 0
    %1085 = vmatprep.subr.bf16.mxu0 0
    %1086 = vmatpush1.bf16.msra.mxu0 0
    %1087 = vmatprep.subr.bf16.mxu0 0
    %1088 = vmatpush1.bf16.msra.mxu0 0
    %1089 = vmatprep.subr.bf16.mxu0 0
    %1090 = vmatpush1.bf16.msra.mxu0 0
    %1091 = vmatprep.subr.bf16.mxu0 0
    %1092 = vmatpush1.bf16.msra.mxu0 0
    %1093 = vmatprep.subr.bf16.mxu0 0
    %1094 = vmatpush1.bf16.msra.mxu0 %v1075
    %1095 = vmatprep.subr.bf16.mxu0 0
    %1096 = vmatpush1.bf16.msra.mxu0 %v1074
    %1097 = vmatprep.subr.bf16.mxu0 0
    %1098 = vmatpush2.bf16.msra.mxu0 0
    %1099 = vmatprep.subr.bf16.mxu0 0
    %1100 = vmatpush2.bf16.msra.mxu0 0
    %1101 = vmatprep.subr.bf16.mxu0 0
    %1102 = vmatpush2.bf16.msra.mxu0 0
    %1103 = vmatprep.subr.bf16.mxu0 0
    %1104 = vmatpush2.bf16.msra.mxu0 0
    %1105 = vmatprep.subr.bf16.mxu0 0
    %1106 = vmatpush2.bf16.msra.mxu0 0
    %1107 = vmatprep.subr.bf16.mxu0 0
    %1108 = vmatpush2.bf16.msra.mxu0 0
    %1109 = vmatprep.subr.bf16.mxu0 0
    %1110 = vmatpush2.bf16.msra.mxu0 0
    %1111 = vmatprep.subr.bf16.mxu0 0
    %1112 = vmatpush2.bf16.msra.mxu0 0
    %1113 = vmatprep.mubr.bf16.mxu0 0
    %1114 = vmatmul.mubr.bf16.gmra.mxu0 %v1079
    %v1115 = vpop.f32.mrf.mxu0
    %v1116 = vadd.f32 %v1065, %v1115
    %v1117 = vpop.f32.mrf.mxu0
    %v1118 = vpop.f32.mrf.mxu0
    %v1119 = vadd.f32 %v1065, %v1118
    %v1120 = vpop.f32.mrf.mxu0
    %1121 = vdwg.mxu0
    %v1122 = vadd.f32 %v1116, %v728
    %v1123 = vadd.f32 %v1119, %v729
    %v1124 = vsel %vm46, %v1122, 0.0
    %1125 = vadd.xlane.f32.xlu0 %v1124
    %v1126 = vpop.xlane.xlu0 %1125
    %v1127 = vsel %vm46, %v1123, 0.0
    %1128 = vadd.xlane.f32.xlu0 %v1127
    %v1129 = vpop.xlane.xlu0 %1128
    %v1130 = vmul.f32 %v1126, %v53
    %v1131 = vmul.f32 %v1129, %v53
    %v1132 = vsub.f32 %v1122, %v1130
    %v1133 = vsub.f32 %v1123, %v1131
    %v1134 = vmul.f32 %v1132, %v1132
    %v1135 = vmul.f32 %v1133, %v1133
    %v1136 = vsel %vm46, %v1134, 0.0
    %1137 = vadd.xlane.f32.xlu0 %v1136
    %v1138 = vpop.xlane.xlu0 %1137
    %v1139 = vsel %vm46, %v1135, 0.0
    %1140 = vadd.xlane.f32.xlu0 %v1139
    %v1141 = vpop.xlane.xlu0 %1140
    %v1142 = vmul.f32 %v1138, %v53
    %v1143 = vmul.f32 %v1141, %v53
    %v1144 = vadd.f32 %v1142, 1e-12
    %v1145 = vadd.f32 %v1143, 1e-12
    %v1146 = vrsqrt.pop %v1144
    %v1147 = vrsqrt.pop %v1145
    %v1148 = vmul.f32 %v1132, %v1146
    %v1149 = vmul.f32 %v1133, %v1147
    %v1150 = vlaneseq
    %v1151 = vshrl.u32 %v1150, 7
    %v1152 = vsub.s32 1, %v1151
    %v1153 = vrot.slane %v38, %v1152
    %v1154 = vmul.f32 %v1148, %v1153
    %v1155 = vmul.f32 %v1149, %v1153
    %v1156 = vlaneseq
    %v1157 = vshrl.u32 %v1156, 7
    %v1158 = vsub.s32 2, %v1157
    %v1159 = vrot.slane %v38, %v1158
    %v1160 = vadd.f32 %v1154, %v1159
    %v1161 = vadd.f32 %v1155, %v1159
    %s1162 = scalar_lea.vmem %s5, 16
    %v1163 = vld [vmem:[%s1162] sm:$0xf]
    %v1164 = vld [vmem:[%s1162 + $0x4] sm:$0xf]
    %v1165 = vld [vmem:[%s1162 + $0x8] sm:$0xf]
    %v1166 = vld [vmem:[%s1162 + $0xc] sm:$0xf]
    %v1167 = vpack.c.bf16 %v1161, %v1160
    %v1168 = vlaneseq
    %v1169 = vshrl.u32 %v1168, 7
    %v1170 = vsub.s32 0, %v1169
    %v1171 = vrot.slane %v41, %v1170
    %v1176 = vunpack.c.l.b16 %v1163
    %v1177 = vunpack.c.l.b16 %v1164
    %v1178 = vunpack.c.l.b16 %v1165
    %v1179 = vunpack.c.l.b16 %v1166
    %v1180 = vpack.c.b16 %v1177, %v1176
    %v1181 = vpack.c.b16 %v1179, %v1178
    %1186 = vrot.lane.b32.xlu0 %v739, 32
    %v1187 = vpop.permute.xlu0 %1186
    %1188 = vrot.lane.b32.xlu0 %v1171, 32
    %v1189 = vpop.permute.xlu0 %1188
    %v1190 = vsel %vm46, %v1187, %v1189
    %v1193 = vsel %vm46, %v1167, 0
    %1195 = vmatprep.subr.bf16.mxu0 0
    %1196 = vmatpush1.bf16.msra.mxu0 0
    %1197 = vmatprep.subr.bf16.mxu0 0
    %1198 = vmatpush1.bf16.msra.mxu0 0
    %1199 = vmatprep.subr.bf16.mxu0 0
    %1200 = vmatpush1.bf16.msra.mxu0 0
    %1201 = vmatprep.subr.bf16.mxu0 0
    %1202 = vmatpush1.bf16.msra.mxu0 0
    %1203 = vmatprep.subr.bf16.mxu0 0
    %1204 = vmatpush1.bf16.msra.mxu0 0
    %1205 = vmatprep.subr.bf16.mxu0 0
    %1206 = vmatpush1.bf16.msra.mxu0 0
    %1207 = vmatprep.subr.bf16.mxu0 0
    %1208 = vmatpush1.bf16.msra.mxu0 %v1181
    %1209 = vmatprep.subr.bf16.mxu0 0
    %1210 = vmatpush1.bf16.msra.mxu0 %v1180
    %1211 = vmatprep.subr.bf16.mxu0 0
    %1212 = vmatpush2.bf16.msra.mxu0 0
    %1213 = vmatprep.subr.bf16.mxu0 0
    %1214 = vmatpush2.bf16.msra.mxu0 0
    %1215 = vmatprep.subr.bf16.mxu0 0
    %1216 = vmatpush2.bf16.msra.mxu0 0
    %1217 = vmatprep.subr.bf16.mxu0 0
    %1218 = vmatpush2.bf16.msra.mxu0 0
    %1219 = vmatprep.subr.bf16.mxu0 0
    %1220 = vmatpush2.bf16.msra.mxu0 0
    %1221 = vmatprep.subr.bf16.mxu0 0
    %1222 = vmatpush2.bf16.msra.mxu0 0
    %1223 = vmatprep.subr.bf16.mxu0 0
    %1224 = vmatpush2.bf16.msra.mxu0 0
    %1225 = vmatprep.subr.bf16.mxu0 0
    %1226 = vmatpush2.bf16.msra.mxu0 0
    %1227 = vmatprep.mubr.bf16.mxu0 0
    %1228 = vmatmul.mubr.bf16.gmra.mxu0 %v1193
    %v1229 = vpop.f32.mrf.mxu0
    %v1230 = vadd.f32 %v1190, %v1229
    %v1231 = vpop.f32.mrf.mxu0
    %v1232 = vpop.f32.mrf.mxu0
    %v1233 = vadd.f32 %v1190, %v1232
    %v1234 = vpop.f32.mrf.mxu0
    %1235 = vdwg.mxu0
    %v1236 = vmul.f32 %v1230, 0.5
    %v1237 = vmul.f32 %v1233, 0.5
    %v1238 = vmul.f32 %v1230, 0.044715
    %v1239 = vmul.f32 %v1233, 0.044715
    %v1240 = vmul.f32 %v1238, %v1230
    %v1241 = vmul.f32 %v1239, %v1233
    %v1242 = vmul.f32 %v1240, %v1230
    %v1243 = vmul.f32 %v1241, %v1233
    %v1244 = vadd.f32 %v1230, %v1242
    %v1245 = vadd.f32 %v1233, %v1243
    %v1246 = vmul.f32 %v1244, 0.7978846
    %v1247 = vmul.f32 %v1245, 0.7978846
    %v1248 = vtanh.pop %v1246
    %v1249 = vtanh.pop %v1247
    %v1250 = vadd.f32 %v1248, 1.0
    %v1251 = vadd.f32 %v1249, 1.0
    %v1252 = vmul.f32 %v1236, %v1250
    %v1253 = vmul.f32 %v1237, %v1251
    %s1254 = scalar_lea.vmem %s6, 32
    %v1255 = vld [vmem:[%s1254] sm:$0xf]
    %v1256 = vld [vmem:[%s1254 + $0x4] sm:$0xf]
    %v1257 = vld [vmem:[%s1254 + $0x8] sm:$0xf]
    %v1258 = vld [vmem:[%s1254 + $0xc] sm:$0xf]
    %v1259 = vld [vmem:[%s1254 + $0x10] sm:$0xf]
    %v1260 = vld [vmem:[%s1254 + $0x14] sm:$0xf]
    %v1261 = vld [vmem:[%s1254 + $0x18] sm:$0xf]
    %v1262 = vld [vmem:[%s1254 + $0x1c] sm:$0xf]
    %v1263 = vpack.c.bf16 %v1253, %v1252
    %v1264 = vlaneseq
    %v1265 = vshrl.u32 %v1264, 7
    %v1266 = vsub.s32 3, %v1265
    %v1267 = vrot.slane %v38, %v1266
    %v1276 = vunpack.c.l.b16 %v1255
    %v1277 = vunpack.c.l.b16 %v1256
    %v1278 = vunpack.c.l.b16 %v1257
    %v1279 = vunpack.c.l.b16 %v1258
    %v1280 = vunpack.c.l.b16 %v1259
    %v1281 = vunpack.c.l.b16 %v1260
    %v1282 = vunpack.c.l.b16 %v1261
    %v1283 = vunpack.c.l.b16 %v1262
    %v1284 = vpack.c.b16 %v1277, %v1276
    %v1285 = vpack.c.b16 %v1279, %v1278
    %v1286 = vpack.c.b16 %v1281, %v1280
    %v1287 = vpack.c.b16 %v1283, %v1282
    %v1293 = vsel %vm645, %v1263, 0
    %1295 = vmatprep.subr.bf16.mxu0 0
    %1296 = vmatpush1.bf16.msra.mxu0 0
    %1297 = vmatprep.subr.bf16.mxu0 0
    %1298 = vmatpush1.bf16.msra.mxu0 0
    %1299 = vmatprep.subr.bf16.mxu0 0
    %1300 = vmatpush1.bf16.msra.mxu0 0
    %1301 = vmatprep.subr.bf16.mxu0 0
    %1302 = vmatpush1.bf16.msra.mxu0 0
    %1303 = vmatprep.subr.bf16.mxu0 0
    %1304 = vmatpush1.bf16.msra.mxu0 %v1287
    %1305 = vmatprep.subr.bf16.mxu0 0
    %1306 = vmatpush1.bf16.msra.mxu0 %v1286
    %1307 = vmatprep.subr.bf16.mxu0 0
    %1308 = vmatpush1.bf16.msra.mxu0 %v1285
    %1309 = vmatprep.subr.bf16.mxu0 0
    %1310 = vmatpush1.bf16.msra.mxu0 %v1284
    %1311 = vmatprep.subr.bf16.mxu0 0
    %1312 = vmatpush2.bf16.msra.mxu0 0
    %1313 = vmatprep.subr.bf16.mxu0 0
    %1314 = vmatpush2.bf16.msra.mxu0 0
    %1315 = vmatprep.subr.bf16.mxu0 0
    %1316 = vmatpush2.bf16.msra.mxu0 0
    %1317 = vmatprep.subr.bf16.mxu0 0
    %1318 = vmatpush2.bf16.msra.mxu0 0
    %1319 = vmatprep.subr.bf16.mxu0 0
    %1320 = vmatpush2.bf16.msra.mxu0 0
    %1321 = vmatprep.subr.bf16.mxu0 0
    %1322 = vmatpush2.bf16.msra.mxu0 0
    %1323 = vmatprep.subr.bf16.mxu0 0
    %1324 = vmatpush2.bf16.msra.mxu0 0
    %1325 = vmatprep.subr.bf16.mxu0 0
    %1326 = vmatpush2.bf16.msra.mxu0 0
    %1327 = vmatprep.mubr.bf16.mxu0 0
    %1328 = vmatmul.mubr.bf16.gmra.mxu0 %v1293
    %v1329 = vpop.f32.mrf.mxu0
    %v1330 = vadd.f32 %v1267, %v1329
    %v1331 = vpop.f32.mrf.mxu0
    %v1332 = vpop.f32.mrf.mxu0
    %v1333 = vadd.f32 %v1267, %v1332
    %v1334 = vpop.f32.mrf.mxu0
    %1335 = vdwg.mxu0
    %v1336 = vadd.f32 %v1330, %v1160
    %v1337 = vadd.f32 %v1333, %v1161
    %v1338 = vsel %vm46, %v1336, 0.0
    %1339 = vadd.xlane.f32.xlu0 %v1338
    %v1340 = vpop.xlane.xlu0 %1339
    %v1341 = vsel %vm46, %v1337, 0.0
    %1342 = vadd.xlane.f32.xlu0 %v1341
    %v1343 = vpop.xlane.xlu0 %1342
    %v1344 = vmul.f32 %v1340, %v53
    %v1345 = vmul.f32 %v1343, %v53
    %v1346 = vsub.f32 %v1336, %v1344
    %v1347 = vsub.f32 %v1337, %v1345
    %v1348 = vmul.f32 %v1346, %v1346
    %v1349 = vmul.f32 %v1347, %v1347
    %v1350 = vsel %vm46, %v1348, 0.0
    %1351 = vadd.xlane.f32.xlu0 %v1350
    %v1352 = vpop.xlane.xlu0 %1351
    %v1353 = vsel %vm46, %v1349, 0.0
    %1354 = vadd.xlane.f32.xlu0 %v1353
    %v1355 = vpop.xlane.xlu0 %1354
    %v1356 = vmul.f32 %v1352, %v53
    %v1357 = vmul.f32 %v1355, %v53
    %v1358 = vadd.f32 %v1356, 1e-12
    %v1359 = vadd.f32 %v1357, 1e-12
    %v1360 = vrsqrt.pop %v1358
    %v1361 = vrsqrt.pop %v1359
    %v1362 = vmul.f32 %v1346, %v1360
    %v1363 = vmul.f32 %v1347, %v1361
    %v1364 = vlaneseq
    %v1365 = vshrl.u32 %v1364, 7
    %v1366 = vsub.s32 4, %v1365
    %v1367 = vrot.slane %v38, %v1366
    %v1368 = vmul.f32 %v1362, %v1367
    %v1369 = vmul.f32 %v1363, %v1367
    %v1370 = vlaneseq
    %v1371 = vshrl.u32 %v1370, 7
    %v1372 = vsub.s32 5, %v1371
    %v1373 = vrot.slane %v38, %v1372
    %v1374 = vadd.f32 %v1368, %v1373
    %v1375 = vadd.f32 %v1369, %v1373
    %v1376 = vlaneseq
    %v1377 = vshrl.u32 %v1376, 7
    %v1378 = vlaneseq
    %v1379 = vand.u32 %v1378, 127
    %v1380 = vmul.u32 %v1377, 8
    %vm1381 = vcmp.eq.s32.totalorder %v1379, %v1380
    %v1382 = vsel %vm1381, 1, 0
    %v1383 = vcvt.s32.f32 %v1382
    %v1384 = vpack.c.bf16 %v1383, %v1383
    %v1385 = vpack.c.bf16 %v1375, %v1374
    %v1387 = vsel %vm155, %v1384, 0
    %1389 = vmatprep.subr.bf16.mxu0 0
    %1390 = vmatpush1.bf16.msra.mxu0 0
    %1391 = vmatprep.subr.bf16.mxu0 0
    %1392 = vmatpush1.bf16.msra.mxu0 0
    %1393 = vmatprep.subr.bf16.mxu0 0
    %1394 = vmatpush1.bf16.msra.mxu0 0
    %1395 = vmatprep.subr.bf16.mxu0 0
    %1396 = vmatpush1.bf16.msra.mxu0 0
    %1397 = vmatprep.subr.bf16.mxu0 0
    %1398 = vmatpush1.bf16.msra.mxu0 0
    %1399 = vmatprep.subr.bf16.mxu0 0
    %1400 = vmatpush1.bf16.msra.mxu0 0
    %1401 = vmatprep.subr.bf16.mxu0 0
    %1402 = vmatpush1.bf16.msra.mxu0 0
    %1403 = vmatprep.subr.bf16.mxu0 0
    %1404 = vmatpush1.bf16.msra.mxu0 %v1385
    %1405 = vmatprep.subr.bf16.mxu0 0
    %1406 = vmatpush2.bf16.msra.mxu0 0
    %1407 = vmatprep.subr.bf16.mxu0 0
    %1408 = vmatpush2.bf16.msra.mxu0 0
    %1409 = vmatprep.subr.bf16.mxu0 0
    %1410 = vmatpush2.bf16.msra.mxu0 0
    %1411 = vmatprep.subr.bf16.mxu0 0
    %1412 = vmatpush2.bf16.msra.mxu0 0
    %1413 = vmatprep.subr.bf16.mxu0 0
    %1414 = vmatpush2.bf16.msra.mxu0 0
    %1415 = vmatprep.subr.bf16.mxu0 0
    %1416 = vmatpush2.bf16.msra.mxu0 0
    %1417 = vmatprep.subr.bf16.mxu0 0
    %1418 = vmatpush2.bf16.msra.mxu0 0
    %1419 = vmatprep.subr.bf16.mxu0 0
    %1420 = vmatpush2.bf16.msra.mxu0 0
    %1421 = vmatprep.mubr.bf16.mxu0 0
    %1422 = vmatmul.mubr.bf16.gmra.mxu0 %v1387
    %v1423 = vpop.f32.mrf.mxu0
    %v1424 = vadd.f32 0.0, %v1423
    %v1425 = vpop.f32.mrf.mxu0
    %v1426 = vpop.f32.mrf.mxu0
    %v1427 = vpop.f32.mrf.mxu0
    %1428 = vdwg.mxu0
    %v1429 = vld [vmem:[%s7] sm:$0xff]
    %v1430 = vld [vmem:[%s7 + $0x8] sm:$0xff]
    %v1431 = vld [vmem:[%s7 + $0x10] sm:$0xff]
    %v1432 = vld [vmem:[%s7 + $0x18] sm:$0xff]
    %v1433 = vpack.c.bf16 %v1424, %v1424
    %v1434 = vlaneseq
    %v1435 = vshrl.u32 %v1434, 7
    %v1436 = vsub.s32 6, %v1435
    %v1437 = vrot.slane %v38, %v1436
    %v1442 = vunpack.c.l.b16 %v1429
    %v1443 = vunpack.c.l.b16 %v1430
    %v1444 = vunpack.c.l.b16 %v1431
    %v1445 = vunpack.c.l.b16 %v1432
    %v1446 = vpack.c.b16 %v1443, %v1442
    %v1447 = vpack.c.b16 %v1445, %v1444
    %v1451 = vsel %vm46, %v1433, 0
    %1453 = vmatprep.subr.bf16.mxu0 0
    %1454 = vmatpush1.bf16.msra.mxu0 0
    %1455 = vmatprep.subr.bf16.mxu0 0
    %1456 = vmatpush1.bf16.msra.mxu0 0
    %1457 = vmatprep.subr.bf16.mxu0 0
    %1458 = vmatpush1.bf16.msra.mxu0 0
    %1459 = vmatprep.subr.bf16.mxu0 0
    %1460 = vmatpush1.bf16.msra.mxu0 0
    %1461 = vmatprep.subr.bf16.mxu0 0
    %1462 = vmatpush1.bf16.msra.mxu0 0
    %1463 = vmatprep.subr.bf16.mxu0 0
    %1464 = vmatpush1.bf16.msra.mxu0 0
    %1465 = vmatprep.subr.bf16.mxu0 0
    %1466 = vmatpush1.bf16.msra.mxu0 %v1447
    %1467 = vmatprep.subr.bf16.mxu0 0
    %1468 = vmatpush1.bf16.msra.mxu0 %v1446
    %1469 = vmatprep.subr.bf16.mxu0 0
    %1470 = vmatpush2.bf16.msra.mxu0 0
    %1471 = vmatprep.subr.bf16.mxu0 0
    %1472 = vmatpush2.bf16.msra.mxu0 0
    %1473 = vmatprep.subr.bf16.mxu0 0
    %1474 = vmatpush2.bf16.msra.mxu0 0
    %1475 = vmatprep.subr.bf16.mxu0 0
    %1476 = vmatpush2.bf16.msra.mxu0 0
    %1477 = vmatprep.subr.bf16.mxu0 0
    %1478 = vmatpush2.bf16.msra.mxu0 0
    %1479 = vmatprep.subr.bf16.mxu0 0
    %1480 = vmatpush2.bf16.msra.mxu0 0
    %1481 = vmatprep.subr.bf16.mxu0 0
    %1482 = vmatpush2.bf16.msra.mxu0 0
    %1483 = vmatprep.subr.bf16.mxu0 0
    %1484 = vmatpush2.bf16.msra.mxu0 0
    %1485 = vmatprep.mubr.bf16.mxu0 0
    %1486 = vmatmul.mubr.bf16.gmra.mxu0 %v1451
    %v1487 = vpop.f32.mrf.mxu0
    %v1488 = vadd.f32 %v1437, %v1487
    %v1489 = vpop.f32.mrf.mxu0
    %v1490 = vpop.f32.mrf.mxu0
    %v1491 = vpop.f32.mrf.mxu0
    %1492 = vdwg.mxu0
    %v1493 = vtanh.pop %v1488
    %v1494 = vld [vmem:[%s1] sm:$0x7]
    %v1495 = vpack.c.bf16 %v1493, %v1493
    %v1496 = vlaneseq
    %v1497 = vshrl.u32 %v1496, 7
    %v1498 = vsub.s32 0, %v1497
    %v1499 = vrot.slane %v1494, %v1498
    %v1500 = vunpack.c.h.b16 %v1429
    %v1501 = vunpack.c.h.b16 %v1430
    %v1502 = vunpack.c.h.b16 %v1431
    %v1503 = vunpack.c.h.b16 %v1432
    %v1504 = vpack.c.b16 %v1501, %v1500
    %v1505 = vpack.c.b16 %v1503, %v1502
    %1506 = vrot.lane.b32.xlu0 %v1446, 96
    %v1507 = vpop.permute.xlu0 %1506
    %1508 = vrot.lane.b32.xlu0 %v1504, 96
    %v1509 = vpop.permute.xlu0 %1508
    %1510 = vrot.lane.b32.xlu0 %v1447, 96
    %v1511 = vpop.permute.xlu0 %1510
    %1512 = vrot.lane.b32.xlu0 %v1505, 96
    %v1513 = vpop.permute.xlu0 %1512
    %vm1514 = vcmask 785408
    %v1515 = vsel %vm1514, %v1507, %v1509
    %v1516 = vsel %vm1514, %v1511, %v1513
    %v1520 = vsel %vm46, %v1495, 0
    %1522 = vmatprep.subr.bf16.mxu0 0
    %1523 = vmatpush1.bf16.msra.mxu0 0
    %1524 = vmatprep.subr.bf16.mxu0 0
    %1525 = vmatpush1.bf16.msra.mxu0 0
    %1526 = vmatprep.subr.bf16.mxu0 0
    %1527 = vmatpush1.bf16.msra.mxu0 0
    %1528 = vmatprep.subr.bf16.mxu0 0
    %1529 = vmatpush1.bf16.msra.mxu0 0
    %1530 = vmatprep.subr.bf16.mxu0 0
    %1531 = vmatpush1.bf16.msra.mxu0 0
    %1532 = vmatprep.subr.bf16.mxu0 0
    %1533 = vmatpush1.bf16.msra.mxu0 0
    %1534 = vmatprep.subr.bf16.mxu0 0
    %1535 = vmatpush1.bf16.msra.mxu0 %v1516
    %1536 = vmatprep.subr.bf16.mxu0 0
    %1537 = vmatpush1.bf16.msra.mxu0 %v1515
    %1538 = vmatprep.subr.bf16.mxu0 0
    %1539 = vmatpush2.bf16.msra.mxu0 0
    %1540 = vmatprep.subr.bf16.mxu0 0
    %1541 = vmatpush2.bf16.msra.mxu0 0
    %1542 = vmatprep.subr.bf16.mxu0 0
    %1543 = vmatpush2.bf16.msra.mxu0 0
    %1544 = vmatprep.subr.bf16.mxu0 0
    %1545 = vmatpush2.bf16.msra.mxu0 0
    %1546 = vmatprep.subr.bf16.mxu0 0
    %1547 = vmatpush2.bf16.msra.mxu0 0
    %1548 = vmatprep.subr.bf16.mxu0 0
    %1549 = vmatpush2.bf16.msra.mxu0 0
    %1550 = vmatprep.subr.bf16.mxu0 0
    %1551 = vmatpush2.bf16.msra.mxu0 0
    %1552 = vmatprep.subr.bf16.mxu0 0
    %1553 = vmatpush2.bf16.msra.mxu0 0
    %1554 = vmatprep.mubr.bf16.mxu0 0
    %1555 = vmatmul.mubr.bf16.gmra.mxu0 %v1520
    %v1556 = vpop.f32.mrf.mxu0
    %v1557 = vadd.f32 %v1499, %v1556
    %v1558 = vpop.f32.mrf.mxu0
    %v1559 = vpop.f32.mrf.mxu0
    %v1560 = vpop.f32.mrf.mxu0
    %1561 = vdwg.mxu0
    %1562 = vst [vmem:[#allocation2] sm:$0x3] %v1557
    %vm1563 = vcmask 1041408
    %v1564 = vsel %vm1563, %v1557, -inf
    %1565 = vmax.xlane.f32.xlu0 %v1564
    %v1566 = vpop.xlane.xlu0 %1565
    %v1567 = vsub.f32 %v1557, %v1566
    %v1568 = vmul.f32 %v1567, 1.442695
    %v1569 = vpow.pop %v1568
    %v1570 = vsel %vm1563, %v1569, 0.0
    %1571 = vadd.xlane.f32.xlu0 %v1570
    %v1572 = vpop.xlane.xlu0 %1571
    %v1573 = vlog2.pop %v1572
    %v1574 = vmul.f32 %v1573, 0.6931472
    %v1575 = vadd.f32 %v1574, %v1566
    %v1577 = vrot.slane %v1494, 1
    %v1579 = vmul.f32 %v1557, %v1577
    %v1580 = vsel %vm1563, %v1579, 0.0
    %1581 = vadd.xlane.f32.xlu0 %v1580
    %v1582 = vpop.xlane.xlu0 %1581
    %v1583 = vsub.f32 %v1575, %v1582
    %v1584 = vsel %vm1563, %v1583, 0.0
    %v1585 = vrot.slane %v1584, 4
    %v1586 = vadd.f32 %v1584, %v1585
    %v1587 = vrot.slane %v1586, 2
    %v1588 = vadd.f32 %v1586, %v1587
    %v1589 = vrot.slane %v1588, 1
    %v1590 = vadd.f32 %v1588, %v1589
    %v1591 = vmul.f32 %v1590, 0.5
    %vm1592 = vcmask 0
    %1593 = vst.msk [vmem:[#allocation4] sm:$0x1] %vm1592, %v1591
    // Predicated region
    $region38: #{bert_forward.1} parent=1 // pred_check
      _
    $region39: #{bert_forward.1} parent=1 // pred_check_branch
      %1595 = sbr.rel (0) target = $region41
    $region40: #{bert_forward.1} parent=1 // pred_region
      %s1597 = ssub.s32 32, 32
      %1598 = vsyncadd [#allocation3], %s1597
      %s1600 = sshll.u32 [#allocation2], 4
      %s1601 = int_to_ptr.vmem [resolvable:$true] %s1600
      %1603 = dma.vmem_to_hbm [thread:$0]  %s1601, 32, %s9, [#allocation3]
    $region41: #{bert_forward.1} parent=1 // pred_fallthru
      _
    // Predicated region
    $region42: #{bert_forward.1} parent=1 // pred_check
      _
    $region43: #{bert_forward.1} parent=1 // pred_check_branch
      %1605 = sbr.rel (0) target = $region45
    $region44: #{bert_forward.1} parent=1 // pred_region
      %s1607 = ssub.s32 16, 16
      %1608 = vsyncadd [#allocation5], %s1607
      %s1610 = sshll.u32 [#allocation4], 4
      %s1611 = int_to_ptr.vmem [resolvable:$true] %s1610
      %1613 = dma.vmem_to_hbm [thread:$0]  %s1611, 16, %s10, [#allocation5]
    $region45: #{bert_forward.1} parent=1 // pred_fallthru
      _
    // Predicated region
    $region46: #{bert_forward.1} parent=1 // pred_check
      _
    $region47: #{bert_forward.1} parent=1 // pred_check_branch
      %1615 = sbr.rel (0) target = $region49
    $region48: #{bert_forward.1} parent=1 // pred_region
      %1616 = dma.done [#allocation3], 32
    $region49: #{bert_forward.1} parent=1 // pred_fallthru
      _
    // Predicated region
    $region50: #{bert_forward.1} parent=1 // pred_check
      _
    $region51: #{bert_forward.1} parent=1 // pred_check_branch
      %1618 = sbr.rel (0) target = $region53
    $region52: #{bert_forward.1} parent=1 // pred_region
      %1619 = dma.done [#allocation5], 16
    $region53: #{bert_forward.1} parent=1 // pred_fallthru
      _
    %1620 = vsyncpa [#allocation3], 1
    %1621 = vsyncpa [#allocation5], 1

</llo_original>
